<compile_context>
chip_gen: v6e
topology: v6e:2x2x1
jax: 0.10.0
libtpu: 0.0.40
codegen_flags: <defaults>
</compile_context>

<pallas_src>
import functools

import jax
import jax.numpy as jnp
from jax import lax
from jax.experimental import pallas as pl
from jax.experimental.pallas import tpu as pltpu

# ---------------------------------------------------------------------------
# Fixed module dimensions: Linear(2,8) -> Linear(8,8) -> Linear(8,1).
D_IN, D_H, D_OUT = 2, 8, 1

# Offsets of each parameter inside the packed f32 vector (row-major weights).
W1_OFF = 0
B1_OFF = W1_OFF + D_IN * D_H          # 16
W2_OFF = B1_OFF + D_H                 # 24
B2_OFF = W2_OFF + D_H * D_H           # 88
W3_OFF = B2_OFF + D_H                 # 96
B3_OFF = W3_OFF + D_H * D_OUT         # 104
PACKED_LEN = 128                      # pad to a tidy power of two

# Row-tile geometry.
LANES = 256                  # lane width (multiple of 128 -> unmasked vst)
SUB = 8                      # sublanes per inner sub-tile (one f32 vreg row-group)
MAX_BLOCK_SUB = 128          # 128 sublanes * 256 lanes = 32768 rows per grid step
TARGET_GRID_STEPS = 8        # keep >= ~8 steps so v7x's 2 TensorCores both get work


def _round_up(a, b):
    return ((a + b - 1) // b) * b


def _pack_params(params):
    """Concatenate all six parameter arrays into one f32[PACKED_LEN] vector."""
    w1, b1, w2, b2, w3, b3 = params
    flat = jnp.concatenate([
        w1.reshape(-1), b1.reshape(-1),
        w2.reshape(-1), b2.reshape(-1),
        w3.reshape(-1), b3.reshape(-1),
    ]).astype(jnp.float32)
    return jnp.pad(flat, (0, PACKED_LEN - flat.shape[0]))


def mlp_kernel(p_ref, x_ref, o_ref, *, sub_tiles):
    """p_ref: f32[PACKED_LEN] in SMEM; x_ref: (D_IN, block_sub, LANES); o_ref: (block_sub, LANES).

    Rows occupy the (SUB, LANES) sub-tiles; features / hidden units are
    unrolled Python loops of VPU vector-scalar multiply-adds.  A fori_loop
    (not a static Python for) walks the sub-tiles so live ranges stay bounded
    while the big block amortizes per-grid-step overhead.
    """
    # Hoist all ~105 loop-invariant scalar parameter reads out of the row loop
    # (SMEM scalar loads; keeps in-loop scalar-slot traffic minimal).
    w1 = [[p_ref[W1_OFF + i * D_H + j] for j in range(D_H)] for i in range(D_IN)]
    b1 = [p_ref[B1_OFF + j] for j in range(D_H)]
    w2 = [[p_ref[W2_OFF + k * D_H + j] for j in range(D_H)] for k in range(D_H)]
    b2 = [p_ref[B2_OFF + j] for j in range(D_H)]
    w3 = [p_ref[W3_OFF + j] for j in range(D_H)]
    b3 = p_ref[B3_OFF]

    def body(s, carry):
        base = pl.multiple_of(s * SUB, SUB)
        x0 = x_ref[0, pl.ds(base, SUB), :]        # (SUB, LANES) plane of feature 0
        x1 = x_ref[1, pl.ds(base, SUB), :]        # (SUB, LANES) plane of feature 1

        # Layer 1: 2 -> 8, ReLU.
        h1 = [
            jnp.maximum(w1[0][j] * x0 + w1[1][j] * x1 + b1[j], 0.0)
            for j in range(D_H)
        ]

        # Layers 2 (8 -> 8, ReLU) and 3 (8 -> 1) fused: each hidden-2 unit is
        # consumed immediately, so only the 8 layer-1 planes stay live.
        out = None
        for j in range(D_H):
            acc = h1[0] * w2[0][j]
            for k in range(1, D_H):
                acc = acc + h1[k] * w2[k][j]
            h2j = jnp.maximum(acc + b2[j], 0.0)
            term = h2j * w3[j]
            out = term if out is None else out + term

        o_ref[pl.ds(base, SUB), :] = (out + b3).astype(o_ref.dtype)
        return carry

    lax.fori_loop(0, sub_tiles, body, 0, unroll=min(2, sub_tiles))


def mlp_reference(x, params):
    """Plain-JAX reference (f32, HIGHEST-precision dots)."""
    w1, b1, w2, b2, w3, b3 = params
    hp = jax.lax.Precision.HIGHEST
    h = jnp.maximum(jnp.dot(x, w1, precision=hp) + b1, 0.0)
    h = jnp.maximum(jnp.dot(h, w2, precision=hp) + b2, 0.0)
    return jnp.dot(h, w3, precision=hp) + b3


@functools.partial(jax.jit, static_argnames=("min_rows_for_kernel",))
def mlp_forward(x, params, *, min_rows_for_kernel=4096):
    """Apply the 2->8->8->1 MLP along the last axis of x via a Pallas kernel."""
    orig_shape = x.shape
    x2 = x.reshape(-1, D_IN).astype(jnp.float32)
    m = x2.shape[0]

    # Small inputs: a kernel launch is pure overhead; XLA fuses the tiny
    # matmuls fine.  (The test below forces the kernel path explicitly.)
    if m < min_rows_for_kernel:
        return mlp_reference(x.astype(jnp.float32), params)

    # Lay rows out on the lane axis: (m, 2) -> (D_IN, r, LANES) feature planes.
    # Pad + reshape are views / tail-only; the transpose is ONE relayout pass
    # (accepted — in-kernel lane-parity deinterleave has risky lowering).
    r = pl.cdiv(m, LANES)
    x2p = jnp.pad(x2, ((0, r * LANES - m), (0, 0)))              # (r*LANES, 2)
    xt = jnp.transpose(x2p.reshape(r, LANES, D_IN), (2, 0, 1))   # (D_IN, r, LANES)

    # Row block per grid step: big enough to amortize ~0.35us step overhead,
    # small enough to keep >= ~TARGET_GRID_STEPS steps for v7x megacore.
    block_sub = min(MAX_BLOCK_SUB,
                    max(SUB, _round_up(pl.cdiv(r, TARGET_GRID_STEPS), SUB)))
    sub_tiles = block_sub // SUB

    out2d = pl.pallas_call(
        functools.partial(mlp_kernel, sub_tiles=sub_tiles),
        out_shape=jax.ShapeDtypeStruct((r, LANES), jnp.float32),
        grid_spec=pltpu.PrefetchScalarGridSpec(
            num_scalar_prefetch=0,
            grid=(pl.cdiv(r, block_sub),),   # ragged last block handled by Pallas
            in_specs=[
                # ~105 packed params, resident in SMEM (read as scalars).
                pl.BlockSpec(memory_space=pltpu.MemorySpace.SMEM),
                # (D_IN, block_sub, LANES) row tile of the feature planes.
                pl.BlockSpec((D_IN, block_sub, LANES), lambda i: (0, i, 0)),
            ],
            out_specs=pl.BlockSpec((block_sub, LANES), lambda i: (i, 0)),
        ),
        compiler_params=pltpu.CompilerParams(
            dimension_semantics=("parallel",),  # shards row blocks across TCs on v7x
        ),
    )(_pack_params(params), xt)

    out = out2d.reshape(-1)[:m]
    return out.reshape(orig_shape[:-1] + (D_OUT,))


def init_params(key):
    """Deterministic init mirroring torch.nn.Linear defaults (U[-1/sqrt(fan_in), +])."""
    sizes = [(D_IN, D_H), (D_H, D_H), (D_H, D_OUT)]
    params = []
    for fan_in, fan_out in sizes:
        key, kw, kb = jax.random.split(key, 3)
        bound = 1.0 / jnp.sqrt(float(fan_in))
        w = jax.random.uniform(kw, (fan_in, fan_out), jnp.float32, -bound, bound)
        b = jax.random.uniform(kb, (fan_out,), jnp.float32, -bound, bound)
        params.extend([w, b])
    return tuple(params)


if __name__ == "__main__":
    key = jax.random.PRNGKey(0)
    kp, kx, kb, kc = jax.random.split(key, 4)
    params = init_params(kp)

    # Input consistent with the surrounding test: the MLP consumes the 2-D
    # coordinate grid of a 3x3 convolution kernel (dim=[3,3]) -> 9 positions
    # with 2 coordinate features each, for a batch of 2 such grids.
    ii, jj = jnp.meshgrid(jnp.arange(3.0), jnp.arange(3.0), indexing="ij")
    coords = jnp.stack([ii.reshape(-1), jj.reshape(-1)], axis=-1)          # (9, 2)
    x_small = coords[None, :, :] + 0.01 * jax.random.normal(kx, (2, 9, 2), jnp.float32)

    # Force the Pallas path even for the tiny test input.
    out_small = mlp_forward(x_small, params, min_rows_for_kernel=0)
    jax.block_until_ready(out_small)
    ref_small = mlp_reference(x_small, params)
    assert out_small.shape == (2, 9, 1), out_small.shape
    assert jnp.allclose(out_small, ref_small, atol=1e-5, rtol=1e-5), "small-input mismatch"

    # Medium check: default threshold -> Pallas path, ragged last row tile.
    x_mid = jax.random.normal(kb, (5, 1000, 2), jnp.float32)
    out_mid = mlp_forward(x_mid, params)
    jax.block_until_ready(out_mid)
    ref_mid = mlp_reference(x_mid, params)
    assert out_mid.shape == (5, 1000, 1), out_mid.shape
    assert jnp.allclose(out_mid, ref_mid, atol=1e-5, rtol=1e-5), "mid-input mismatch"

    # Larger check: exercises multi-step grid AND sub_tiles > 1 in the inner
    # fori_loop (33333 rows -> block_sub > SUB, ragged last grid block).
    x_big = jax.random.normal(kc, (3, 11111, 2), jnp.float32)
    out_big = mlp_forward(x_big, params)
    jax.block_until_ready(out_big)
    ref_big = mlp_reference(x_big, params)
    assert out_big.shape == (3, 11111, 1), out_big.shape
    assert jnp.allclose(out_big, ref_big, atol=1e-5, rtol=1e-5), "large-input mismatch"

    print("KERNEL_OK")
</pallas_src>

<mosaic_0001>
module attributes {stable_mosaic.version = 11 : i64} {
  func.func @mlp_kernel(%arg0: i32, %arg1: memref<128xf32, #tpu.memory_space<smem>>, %arg2: memref<2x8x256xf32, #tpu.memory_space<vmem>>, %arg3: memref<8x256xf32, #tpu.memory_space<vmem>>) attributes {dimension_semantics = [#tpu.dimension_semantics<parallel>], iteration_bounds = array<i64: 1>, scalar_prefetch = 0 : i64, scratch_operands = 0 : i64, tpu.core_type = #tpu.core_type<tc>, window_params = [{transform_indices = @transform_0, window_bounds = array<i64: 128>}, {transform_indices = @transform_1, window_bounds = array<i64: 2, 8, 256>}, {transform_indices = @transform_2, window_bounds = array<i64: 8, 256>}]} {
    %c0 = arith.constant 0 : index
    %0 = memref.load %arg1[%c0] : memref<128xf32, #tpu.memory_space<smem>>
    %c1 = arith.constant 1 : index
    %1 = memref.load %arg1[%c1] : memref<128xf32, #tpu.memory_space<smem>>
    %c2 = arith.constant 2 : index
    %2 = memref.load %arg1[%c2] : memref<128xf32, #tpu.memory_space<smem>>
    %c3 = arith.constant 3 : index
    %3 = memref.load %arg1[%c3] : memref<128xf32, #tpu.memory_space<smem>>
    %c4 = arith.constant 4 : index
    %4 = memref.load %arg1[%c4] : memref<128xf32, #tpu.memory_space<smem>>
    %c5 = arith.constant 5 : index
    %5 = memref.load %arg1[%c5] : memref<128xf32, #tpu.memory_space<smem>>
    %c6 = arith.constant 6 : index
    %6 = memref.load %arg1[%c6] : memref<128xf32, #tpu.memory_space<smem>>
    %c7 = arith.constant 7 : index
    %7 = memref.load %arg1[%c7] : memref<128xf32, #tpu.memory_space<smem>>
    %c8 = arith.constant 8 : index
    %8 = memref.load %arg1[%c8] : memref<128xf32, #tpu.memory_space<smem>>
    %c9 = arith.constant 9 : index
    %9 = memref.load %arg1[%c9] : memref<128xf32, #tpu.memory_space<smem>>
    %c10 = arith.constant 10 : index
    %10 = memref.load %arg1[%c10] : memref<128xf32, #tpu.memory_space<smem>>
    %c11 = arith.constant 11 : index
    %11 = memref.load %arg1[%c11] : memref<128xf32, #tpu.memory_space<smem>>
    %c12 = arith.constant 12 : index
    %12 = memref.load %arg1[%c12] : memref<128xf32, #tpu.memory_space<smem>>
    %c13 = arith.constant 13 : index
    %13 = memref.load %arg1[%c13] : memref<128xf32, #tpu.memory_space<smem>>
    %c14 = arith.constant 14 : index
    %14 = memref.load %arg1[%c14] : memref<128xf32, #tpu.memory_space<smem>>
    %c15 = arith.constant 15 : index
    %15 = memref.load %arg1[%c15] : memref<128xf32, #tpu.memory_space<smem>>
    %c16 = arith.constant 16 : index
    %16 = memref.load %arg1[%c16] : memref<128xf32, #tpu.memory_space<smem>>
    %c17 = arith.constant 17 : index
    %17 = memref.load %arg1[%c17] : memref<128xf32, #tpu.memory_space<smem>>
    %c18 = arith.constant 18 : index
    %18 = memref.load %arg1[%c18] : memref<128xf32, #tpu.memory_space<smem>>
    %c19 = arith.constant 19 : index
    %19 = memref.load %arg1[%c19] : memref<128xf32, #tpu.memory_space<smem>>
    %c20 = arith.constant 20 : index
    %20 = memref.load %arg1[%c20] : memref<128xf32, #tpu.memory_space<smem>>
    %c21 = arith.constant 21 : index
    %21 = memref.load %arg1[%c21] : memref<128xf32, #tpu.memory_space<smem>>
    %c22 = arith.constant 22 : index
    %22 = memref.load %arg1[%c22] : memref<128xf32, #tpu.memory_space<smem>>
    %c23 = arith.constant 23 : index
    %23 = memref.load %arg1[%c23] : memref<128xf32, #tpu.memory_space<smem>>
    %c24 = arith.constant 24 : index
    %24 = memref.load %arg1[%c24] : memref<128xf32, #tpu.memory_space<smem>>
    %c25 = arith.constant 25 : index
    %25 = memref.load %arg1[%c25] : memref<128xf32, #tpu.memory_space<smem>>
    %c26 = arith.constant 26 : index
    %26 = memref.load %arg1[%c26] : memref<128xf32, #tpu.memory_space<smem>>
    %c27 = arith.constant 27 : index
    %27 = memref.load %arg1[%c27] : memref<128xf32, #tpu.memory_space<smem>>
    %c28 = arith.constant 28 : index
    %28 = memref.load %arg1[%c28] : memref<128xf32, #tpu.memory_space<smem>>
    %c29 = arith.constant 29 : index
    %29 = memref.load %arg1[%c29] : memref<128xf32, #tpu.memory_space<smem>>
    %c30 = arith.constant 30 : index
    %30 = memref.load %arg1[%c30] : memref<128xf32, #tpu.memory_space<smem>>
    %c31 = arith.constant 31 : index
    %31 = memref.load %arg1[%c31] : memref<128xf32, #tpu.memory_space<smem>>
    %c32 = arith.constant 32 : index
    %32 = memref.load %arg1[%c32] : memref<128xf32, #tpu.memory_space<smem>>
    %c33 = arith.constant 33 : index
    %33 = memref.load %arg1[%c33] : memref<128xf32, #tpu.memory_space<smem>>
    %c34 = arith.constant 34 : index
    %34 = memref.load %arg1[%c34] : memref<128xf32, #tpu.memory_space<smem>>
    %c35 = arith.constant 35 : index
    %35 = memref.load %arg1[%c35] : memref<128xf32, #tpu.memory_space<smem>>
    %c36 = arith.constant 36 : index
    %36 = memref.load %arg1[%c36] : memref<128xf32, #tpu.memory_space<smem>>
    %c37 = arith.constant 37 : index
    %37 = memref.load %arg1[%c37] : memref<128xf32, #tpu.memory_space<smem>>
    %c38 = arith.constant 38 : index
    %38 = memref.load %arg1[%c38] : memref<128xf32, #tpu.memory_space<smem>>
    %c39 = arith.constant 39 : index
    %39 = memref.load %arg1[%c39] : memref<128xf32, #tpu.memory_space<smem>>
    %c40 = arith.constant 40 : index
    %40 = memref.load %arg1[%c40] : memref<128xf32, #tpu.memory_space<smem>>
    %c41 = arith.constant 41 : index
    %41 = memref.load %arg1[%c41] : memref<128xf32, #tpu.memory_space<smem>>
    %c42 = arith.constant 42 : index
    %42 = memref.load %arg1[%c42] : memref<128xf32, #tpu.memory_space<smem>>
    %c43 = arith.constant 43 : index
    %43 = memref.load %arg1[%c43] : memref<128xf32, #tpu.memory_space<smem>>
    %c44 = arith.constant 44 : index
    %44 = memref.load %arg1[%c44] : memref<128xf32, #tpu.memory_space<smem>>
    %c45 = arith.constant 45 : index
    %45 = memref.load %arg1[%c45] : memref<128xf32, #tpu.memory_space<smem>>
    %c46 = arith.constant 46 : index
    %46 = memref.load %arg1[%c46] : memref<128xf32, #tpu.memory_space<smem>>
    %c47 = arith.constant 47 : index
    %47 = memref.load %arg1[%c47] : memref<128xf32, #tpu.memory_space<smem>>
    %c48 = arith.constant 48 : index
    %48 = memref.load %arg1[%c48] : memref<128xf32, #tpu.memory_space<smem>>
    %c49 = arith.constant 49 : index
    %49 = memref.load %arg1[%c49] : memref<128xf32, #tpu.memory_space<smem>>
    %c50 = arith.constant 50 : index
    %50 = memref.load %arg1[%c50] : memref<128xf32, #tpu.memory_space<smem>>
    %c51 = arith.constant 51 : index
    %51 = memref.load %arg1[%c51] : memref<128xf32, #tpu.memory_space<smem>>
    %c52 = arith.constant 52 : index
    %52 = memref.load %arg1[%c52] : memref<128xf32, #tpu.memory_space<smem>>
    %c53 = arith.constant 53 : index
    %53 = memref.load %arg1[%c53] : memref<128xf32, #tpu.memory_space<smem>>
    %c54 = arith.constant 54 : index
    %54 = memref.load %arg1[%c54] : memref<128xf32, #tpu.memory_space<smem>>
    %c55 = arith.constant 55 : index
    %55 = memref.load %arg1[%c55] : memref<128xf32, #tpu.memory_space<smem>>
    %c56 = arith.constant 56 : index
    %56 = memref.load %arg1[%c56] : memref<128xf32, #tpu.memory_space<smem>>
    %c57 = arith.constant 57 : index
    %57 = memref.load %arg1[%c57] : memref<128xf32, #tpu.memory_space<smem>>
    %c58 = arith.constant 58 : index
    %58 = memref.load %arg1[%c58] : memref<128xf32, #tpu.memory_space<smem>>
    %c59 = arith.constant 59 : index
    %59 = memref.load %arg1[%c59] : memref<128xf32, #tpu.memory_space<smem>>
    %c60 = arith.constant 60 : index
    %60 = memref.load %arg1[%c60] : memref<128xf32, #tpu.memory_space<smem>>
    %c61 = arith.constant 61 : index
    %61 = memref.load %arg1[%c61] : memref<128xf32, #tpu.memory_space<smem>>
    %c62 = arith.constant 62 : index
    %62 = memref.load %arg1[%c62] : memref<128xf32, #tpu.memory_space<smem>>
    %c63 = arith.constant 63 : index
    %63 = memref.load %arg1[%c63] : memref<128xf32, #tpu.memory_space<smem>>
    %c64 = arith.constant 64 : index
    %64 = memref.load %arg1[%c64] : memref<128xf32, #tpu.memory_space<smem>>
    %c65 = arith.constant 65 : index
    %65 = memref.load %arg1[%c65] : memref<128xf32, #tpu.memory_space<smem>>
    %c66 = arith.constant 66 : index
    %66 = memref.load %arg1[%c66] : memref<128xf32, #tpu.memory_space<smem>>
    %c67 = arith.constant 67 : index
    %67 = memref.load %arg1[%c67] : memref<128xf32, #tpu.memory_space<smem>>
    %c68 = arith.constant 68 : index
    %68 = memref.load %arg1[%c68] : memref<128xf32, #tpu.memory_space<smem>>
    %c69 = arith.constant 69 : index
    %69 = memref.load %arg1[%c69] : memref<128xf32, #tpu.memory_space<smem>>
    %c70 = arith.constant 70 : index
    %70 = memref.load %arg1[%c70] : memref<128xf32, #tpu.memory_space<smem>>
    %c71 = arith.constant 71 : index
    %71 = memref.load %arg1[%c71] : memref<128xf32, #tpu.memory_space<smem>>
    %c72 = arith.constant 72 : index
    %72 = memref.load %arg1[%c72] : memref<128xf32, #tpu.memory_space<smem>>
    %c73 = arith.constant 73 : index
    %73 = memref.load %arg1[%c73] : memref<128xf32, #tpu.memory_space<smem>>
    %c74 = arith.constant 74 : index
    %74 = memref.load %arg1[%c74] : memref<128xf32, #tpu.memory_space<smem>>
    %c75 = arith.constant 75 : index
    %75 = memref.load %arg1[%c75] : memref<128xf32, #tpu.memory_space<smem>>
    %c76 = arith.constant 76 : index
    %76 = memref.load %arg1[%c76] : memref<128xf32, #tpu.memory_space<smem>>
    %c77 = arith.constant 77 : index
    %77 = memref.load %arg1[%c77] : memref<128xf32, #tpu.memory_space<smem>>
    %c78 = arith.constant 78 : index
    %78 = memref.load %arg1[%c78] : memref<128xf32, #tpu.memory_space<smem>>
    %c79 = arith.constant 79 : index
    %79 = memref.load %arg1[%c79] : memref<128xf32, #tpu.memory_space<smem>>
    %c80 = arith.constant 80 : index
    %80 = memref.load %arg1[%c80] : memref<128xf32, #tpu.memory_space<smem>>
    %c81 = arith.constant 81 : index
    %81 = memref.load %arg1[%c81] : memref<128xf32, #tpu.memory_space<smem>>
    %c82 = arith.constant 82 : index
    %82 = memref.load %arg1[%c82] : memref<128xf32, #tpu.memory_space<smem>>
    %c83 = arith.constant 83 : index
    %83 = memref.load %arg1[%c83] : memref<128xf32, #tpu.memory_space<smem>>
    %c84 = arith.constant 84 : index
    %84 = memref.load %arg1[%c84] : memref<128xf32, #tpu.memory_space<smem>>
    %c85 = arith.constant 85 : index
    %85 = memref.load %arg1[%c85] : memref<128xf32, #tpu.memory_space<smem>>
    %c86 = arith.constant 86 : index
    %86 = memref.load %arg1[%c86] : memref<128xf32, #tpu.memory_space<smem>>
    %c87 = arith.constant 87 : index
    %87 = memref.load %arg1[%c87] : memref<128xf32, #tpu.memory_space<smem>>
    %c88 = arith.constant 88 : index
    %88 = memref.load %arg1[%c88] : memref<128xf32, #tpu.memory_space<smem>>
    %c89 = arith.constant 89 : index
    %89 = memref.load %arg1[%c89] : memref<128xf32, #tpu.memory_space<smem>>
    %c90 = arith.constant 90 : index
    %90 = memref.load %arg1[%c90] : memref<128xf32, #tpu.memory_space<smem>>
    %c91 = arith.constant 91 : index
    %91 = memref.load %arg1[%c91] : memref<128xf32, #tpu.memory_space<smem>>
    %c92 = arith.constant 92 : index
    %92 = memref.load %arg1[%c92] : memref<128xf32, #tpu.memory_space<smem>>
    %c93 = arith.constant 93 : index
    %93 = memref.load %arg1[%c93] : memref<128xf32, #tpu.memory_space<smem>>
    %c94 = arith.constant 94 : index
    %94 = memref.load %arg1[%c94] : memref<128xf32, #tpu.memory_space<smem>>
    %c95 = arith.constant 95 : index
    %95 = memref.load %arg1[%c95] : memref<128xf32, #tpu.memory_space<smem>>
    %c96 = arith.constant 96 : index
    %96 = memref.load %arg1[%c96] : memref<128xf32, #tpu.memory_space<smem>>
    %c97 = arith.constant 97 : index
    %97 = memref.load %arg1[%c97] : memref<128xf32, #tpu.memory_space<smem>>
    %c98 = arith.constant 98 : index
    %98 = memref.load %arg1[%c98] : memref<128xf32, #tpu.memory_space<smem>>
    %c99 = arith.constant 99 : index
    %99 = memref.load %arg1[%c99] : memref<128xf32, #tpu.memory_space<smem>>
    %c100 = arith.constant 100 : index
    %100 = memref.load %arg1[%c100] : memref<128xf32, #tpu.memory_space<smem>>
    %c101 = arith.constant 101 : index
    %101 = memref.load %arg1[%c101] : memref<128xf32, #tpu.memory_space<smem>>
    %c102 = arith.constant 102 : index
    %102 = memref.load %arg1[%c102] : memref<128xf32, #tpu.memory_space<smem>>
    %c103 = arith.constant 103 : index
    %103 = memref.load %arg1[%c103] : memref<128xf32, #tpu.memory_space<smem>>
    %c104 = arith.constant 104 : index
    %104 = memref.load %arg1[%c104] : memref<128xf32, #tpu.memory_space<smem>>
    %c0_i32 = arith.constant 0 : i32
    %c8_i32 = arith.constant 8 : i32
    %105 = arith.muli %c0_i32, %c8_i32 : i32
    %106 = tpu.assume_multiple %105, 8 : i32
    %c0_0 = arith.constant 0 : index
    %107 = arith.index_cast %106 : i32 to index
    %c0_1 = arith.constant 0 : index
    %108 = vector.load %arg2[%c0_0, %107, %c0_1] : memref<2x8x256xf32, #tpu.memory_space<vmem>>, vector<1x8x256xf32>
    %109 = vector.shape_cast %108 : vector<1x8x256xf32> to vector<8x256xf32>
    %c1_2 = arith.constant 1 : index
    %110 = arith.index_cast %106 : i32 to index
    %c0_3 = arith.constant 0 : index
    %111 = vector.load %arg2[%c1_2, %110, %c0_3] : memref<2x8x256xf32, #tpu.memory_space<vmem>>, vector<1x8x256xf32>
    %112 = vector.shape_cast %111 : vector<1x8x256xf32> to vector<8x256xf32>
    %113 = vector.broadcast %0 : f32 to vector<8x256xf32>
    %114 = arith.mulf %113, %109 : vector<8x256xf32>
    %115 = vector.broadcast %8 : f32 to vector<8x256xf32>
    %116 = arith.mulf %115, %112 : vector<8x256xf32>
    %117 = arith.addf %114, %116 : vector<8x256xf32>
    %118 = vector.broadcast %16 : f32 to vector<8x256xf32>
    %119 = arith.addf %117, %118 : vector<8x256xf32>
    %cst = arith.constant 0.000000e+00 : f32
    %120 = vector.broadcast %cst : f32 to vector<8x256xf32>
    %121 = arith.maximumf %119, %120 : vector<8x256xf32>
    %122 = vector.broadcast %1 : f32 to vector<8x256xf32>
    %123 = arith.mulf %122, %109 : vector<8x256xf32>
    %124 = vector.broadcast %9 : f32 to vector<8x256xf32>
    %125 = arith.mulf %124, %112 : vector<8x256xf32>
    %126 = arith.addf %123, %125 : vector<8x256xf32>
    %127 = vector.broadcast %17 : f32 to vector<8x256xf32>
    %128 = arith.addf %126, %127 : vector<8x256xf32>
    %cst_4 = arith.constant 0.000000e+00 : f32
    %129 = vector.broadcast %cst_4 : f32 to vector<8x256xf32>
    %130 = arith.maximumf %128, %129 : vector<8x256xf32>
    %131 = vector.broadcast %2 : f32 to vector<8x256xf32>
    %132 = arith.mulf %131, %109 : vector<8x256xf32>
    %133 = vector.broadcast %10 : f32 to vector<8x256xf32>
    %134 = arith.mulf %133, %112 : vector<8x256xf32>
    %135 = arith.addf %132, %134 : vector<8x256xf32>
    %136 = vector.broadcast %18 : f32 to vector<8x256xf32>
    %137 = arith.addf %135, %136 : vector<8x256xf32>
    %cst_5 = arith.constant 0.000000e+00 : f32
    %138 = vector.broadcast %cst_5 : f32 to vector<8x256xf32>
    %139 = arith.maximumf %137, %138 : vector<8x256xf32>
    %140 = vector.broadcast %3 : f32 to vector<8x256xf32>
    %141 = arith.mulf %140, %109 : vector<8x256xf32>
    %142 = vector.broadcast %11 : f32 to vector<8x256xf32>
    %143 = arith.mulf %142, %112 : vector<8x256xf32>
    %144 = arith.addf %141, %143 : vector<8x256xf32>
    %145 = vector.broadcast %19 : f32 to vector<8x256xf32>
    %146 = arith.addf %144, %145 : vector<8x256xf32>
    %cst_6 = arith.constant 0.000000e+00 : f32
    %147 = vector.broadcast %cst_6 : f32 to vector<8x256xf32>
    %148 = arith.maximumf %146, %147 : vector<8x256xf32>
    %149 = vector.broadcast %4 : f32 to vector<8x256xf32>
    %150 = arith.mulf %149, %109 : vector<8x256xf32>
    %151 = vector.broadcast %12 : f32 to vector<8x256xf32>
    %152 = arith.mulf %151, %112 : vector<8x256xf32>
    %153 = arith.addf %150, %152 : vector<8x256xf32>
    %154 = vector.broadcast %20 : f32 to vector<8x256xf32>
    %155 = arith.addf %153, %154 : vector<8x256xf32>
    %cst_7 = arith.constant 0.000000e+00 : f32
    %156 = vector.broadcast %cst_7 : f32 to vector<8x256xf32>
    %157 = arith.maximumf %155, %156 : vector<8x256xf32>
    %158 = vector.broadcast %5 : f32 to vector<8x256xf32>
    %159 = arith.mulf %158, %109 : vector<8x256xf32>
    %160 = vector.broadcast %13 : f32 to vector<8x256xf32>
    %161 = arith.mulf %160, %112 : vector<8x256xf32>
    %162 = arith.addf %159, %161 : vector<8x256xf32>
    %163 = vector.broadcast %21 : f32 to vector<8x256xf32>
    %164 = arith.addf %162, %163 : vector<8x256xf32>
    %cst_8 = arith.constant 0.000000e+00 : f32
    %165 = vector.broadcast %cst_8 : f32 to vector<8x256xf32>
    %166 = arith.maximumf %164, %165 : vector<8x256xf32>
    %167 = vector.broadcast %6 : f32 to vector<8x256xf32>
    %168 = arith.mulf %167, %109 : vector<8x256xf32>
    %169 = vector.broadcast %14 : f32 to vector<8x256xf32>
    %170 = arith.mulf %169, %112 : vector<8x256xf32>
    %171 = arith.addf %168, %170 : vector<8x256xf32>
    %172 = vector.broadcast %22 : f32 to vector<8x256xf32>
    %173 = arith.addf %171, %172 : vector<8x256xf32>
    %cst_9 = arith.constant 0.000000e+00 : f32
    %174 = vector.broadcast %cst_9 : f32 to vector<8x256xf32>
    %175 = arith.maximumf %173, %174 : vector<8x256xf32>
    %176 = vector.broadcast %7 : f32 to vector<8x256xf32>
    %177 = arith.mulf %176, %109 : vector<8x256xf32>
    %178 = vector.broadcast %15 : f32 to vector<8x256xf32>
    %179 = arith.mulf %178, %112 : vector<8x256xf32>
    %180 = arith.addf %177, %179 : vector<8x256xf32>
    %181 = vector.broadcast %23 : f32 to vector<8x256xf32>
    %182 = arith.addf %180, %181 : vector<8x256xf32>
    %cst_10 = arith.constant 0.000000e+00 : f32
    %183 = vector.broadcast %cst_10 : f32 to vector<8x256xf32>
    %184 = arith.maximumf %182, %183 : vector<8x256xf32>
    %185 = vector.broadcast %24 : f32 to vector<8x256xf32>
    %186 = arith.mulf %121, %185 : vector<8x256xf32>
    %187 = vector.broadcast %32 : f32 to vector<8x256xf32>
    %188 = arith.mulf %130, %187 : vector<8x256xf32>
    %189 = arith.addf %186, %188 : vector<8x256xf32>
    %190 = vector.broadcast %40 : f32 to vector<8x256xf32>
    %191 = arith.mulf %139, %190 : vector<8x256xf32>
    %192 = arith.addf %189, %191 : vector<8x256xf32>
    %193 = vector.broadcast %48 : f32 to vector<8x256xf32>
    %194 = arith.mulf %148, %193 : vector<8x256xf32>
    %195 = arith.addf %192, %194 : vector<8x256xf32>
    %196 = vector.broadcast %56 : f32 to vector<8x256xf32>
    %197 = arith.mulf %157, %196 : vector<8x256xf32>
    %198 = arith.addf %195, %197 : vector<8x256xf32>
    %199 = vector.broadcast %64 : f32 to vector<8x256xf32>
    %200 = arith.mulf %166, %199 : vector<8x256xf32>
    %201 = arith.addf %198, %200 : vector<8x256xf32>
    %202 = vector.broadcast %72 : f32 to vector<8x256xf32>
    %203 = arith.mulf %175, %202 : vector<8x256xf32>
    %204 = arith.addf %201, %203 : vector<8x256xf32>
    %205 = vector.broadcast %80 : f32 to vector<8x256xf32>
    %206 = arith.mulf %184, %205 : vector<8x256xf32>
    %207 = arith.addf %204, %206 : vector<8x256xf32>
    %208 = vector.broadcast %88 : f32 to vector<8x256xf32>
    %209 = arith.addf %207, %208 : vector<8x256xf32>
    %cst_11 = arith.constant 0.000000e+00 : f32
    %210 = vector.broadcast %cst_11 : f32 to vector<8x256xf32>
    %211 = arith.maximumf %209, %210 : vector<8x256xf32>
    %212 = vector.broadcast %96 : f32 to vector<8x256xf32>
    %213 = arith.mulf %211, %212 : vector<8x256xf32>
    %214 = vector.broadcast %25 : f32 to vector<8x256xf32>
    %215 = arith.mulf %121, %214 : vector<8x256xf32>
    %216 = vector.broadcast %33 : f32 to vector<8x256xf32>
    %217 = arith.mulf %130, %216 : vector<8x256xf32>
    %218 = arith.addf %215, %217 : vector<8x256xf32>
    %219 = vector.broadcast %41 : f32 to vector<8x256xf32>
    %220 = arith.mulf %139, %219 : vector<8x256xf32>
    %221 = arith.addf %218, %220 : vector<8x256xf32>
    %222 = vector.broadcast %49 : f32 to vector<8x256xf32>
    %223 = arith.mulf %148, %222 : vector<8x256xf32>
    %224 = arith.addf %221, %223 : vector<8x256xf32>
    %225 = vector.broadcast %57 : f32 to vector<8x256xf32>
    %226 = arith.mulf %157, %225 : vector<8x256xf32>
    %227 = arith.addf %224, %226 : vector<8x256xf32>
    %228 = vector.broadcast %65 : f32 to vector<8x256xf32>
    %229 = arith.mulf %166, %228 : vector<8x256xf32>
    %230 = arith.addf %227, %229 : vector<8x256xf32>
    %231 = vector.broadcast %73 : f32 to vector<8x256xf32>
    %232 = arith.mulf %175, %231 : vector<8x256xf32>
    %233 = arith.addf %230, %232 : vector<8x256xf32>
    %234 = vector.broadcast %81 : f32 to vector<8x256xf32>
    %235 = arith.mulf %184, %234 : vector<8x256xf32>
    %236 = arith.addf %233, %235 : vector<8x256xf32>
    %237 = vector.broadcast %89 : f32 to vector<8x256xf32>
    %238 = arith.addf %236, %237 : vector<8x256xf32>
    %cst_12 = arith.constant 0.000000e+00 : f32
    %239 = vector.broadcast %cst_12 : f32 to vector<8x256xf32>
    %240 = arith.maximumf %238, %239 : vector<8x256xf32>
    %241 = vector.broadcast %97 : f32 to vector<8x256xf32>
    %242 = arith.mulf %240, %241 : vector<8x256xf32>
    %243 = arith.addf %213, %242 : vector<8x256xf32>
    %244 = vector.broadcast %26 : f32 to vector<8x256xf32>
    %245 = arith.mulf %121, %244 : vector<8x256xf32>
    %246 = vector.broadcast %34 : f32 to vector<8x256xf32>
    %247 = arith.mulf %130, %246 : vector<8x256xf32>
    %248 = arith.addf %245, %247 : vector<8x256xf32>
    %249 = vector.broadcast %42 : f32 to vector<8x256xf32>
    %250 = arith.mulf %139, %249 : vector<8x256xf32>
    %251 = arith.addf %248, %250 : vector<8x256xf32>
    %252 = vector.broadcast %50 : f32 to vector<8x256xf32>
    %253 = arith.mulf %148, %252 : vector<8x256xf32>
    %254 = arith.addf %251, %253 : vector<8x256xf32>
    %255 = vector.broadcast %58 : f32 to vector<8x256xf32>
    %256 = arith.mulf %157, %255 : vector<8x256xf32>
    %257 = arith.addf %254, %256 : vector<8x256xf32>
    %258 = vector.broadcast %66 : f32 to vector<8x256xf32>
    %259 = arith.mulf %166, %258 : vector<8x256xf32>
    %260 = arith.addf %257, %259 : vector<8x256xf32>
    %261 = vector.broadcast %74 : f32 to vector<8x256xf32>
    %262 = arith.mulf %175, %261 : vector<8x256xf32>
    %263 = arith.addf %260, %262 : vector<8x256xf32>
    %264 = vector.broadcast %82 : f32 to vector<8x256xf32>
    %265 = arith.mulf %184, %264 : vector<8x256xf32>
    %266 = arith.addf %263, %265 : vector<8x256xf32>
    %267 = vector.broadcast %90 : f32 to vector<8x256xf32>
    %268 = arith.addf %266, %267 : vector<8x256xf32>
    %cst_13 = arith.constant 0.000000e+00 : f32
    %269 = vector.broadcast %cst_13 : f32 to vector<8x256xf32>
    %270 = arith.maximumf %268, %269 : vector<8x256xf32>
    %271 = vector.broadcast %98 : f32 to vector<8x256xf32>
    %272 = arith.mulf %270, %271 : vector<8x256xf32>
    %273 = arith.addf %243, %272 : vector<8x256xf32>
    %274 = vector.broadcast %27 : f32 to vector<8x256xf32>
    %275 = arith.mulf %121, %274 : vector<8x256xf32>
    %276 = vector.broadcast %35 : f32 to vector<8x256xf32>
    %277 = arith.mulf %130, %276 : vector<8x256xf32>
    %278 = arith.addf %275, %277 : vector<8x256xf32>
    %279 = vector.broadcast %43 : f32 to vector<8x256xf32>
    %280 = arith.mulf %139, %279 : vector<8x256xf32>
    %281 = arith.addf %278, %280 : vector<8x256xf32>
    %282 = vector.broadcast %51 : f32 to vector<8x256xf32>
    %283 = arith.mulf %148, %282 : vector<8x256xf32>
    %284 = arith.addf %281, %283 : vector<8x256xf32>
    %285 = vector.broadcast %59 : f32 to vector<8x256xf32>
    %286 = arith.mulf %157, %285 : vector<8x256xf32>
    %287 = arith.addf %284, %286 : vector<8x256xf32>
    %288 = vector.broadcast %67 : f32 to vector<8x256xf32>
    %289 = arith.mulf %166, %288 : vector<8x256xf32>
    %290 = arith.addf %287, %289 : vector<8x256xf32>
    %291 = vector.broadcast %75 : f32 to vector<8x256xf32>
    %292 = arith.mulf %175, %291 : vector<8x256xf32>
    %293 = arith.addf %290, %292 : vector<8x256xf32>
    %294 = vector.broadcast %83 : f32 to vector<8x256xf32>
    %295 = arith.mulf %184, %294 : vector<8x256xf32>
    %296 = arith.addf %293, %295 : vector<8x256xf32>
    %297 = vector.broadcast %91 : f32 to vector<8x256xf32>
    %298 = arith.addf %296, %297 : vector<8x256xf32>
    %cst_14 = arith.constant 0.000000e+00 : f32
    %299 = vector.broadcast %cst_14 : f32 to vector<8x256xf32>
    %300 = arith.maximumf %298, %299 : vector<8x256xf32>
    %301 = vector.broadcast %99 : f32 to vector<8x256xf32>
    %302 = arith.mulf %300, %301 : vector<8x256xf32>
    %303 = arith.addf %273, %302 : vector<8x256xf32>
    %304 = vector.broadcast %28 : f32 to vector<8x256xf32>
    %305 = arith.mulf %121, %304 : vector<8x256xf32>
    %306 = vector.broadcast %36 : f32 to vector<8x256xf32>
    %307 = arith.mulf %130, %306 : vector<8x256xf32>
    %308 = arith.addf %305, %307 : vector<8x256xf32>
    %309 = vector.broadcast %44 : f32 to vector<8x256xf32>
    %310 = arith.mulf %139, %309 : vector<8x256xf32>
    %311 = arith.addf %308, %310 : vector<8x256xf32>
    %312 = vector.broadcast %52 : f32 to vector<8x256xf32>
    %313 = arith.mulf %148, %312 : vector<8x256xf32>
    %314 = arith.addf %311, %313 : vector<8x256xf32>
    %315 = vector.broadcast %60 : f32 to vector<8x256xf32>
    %316 = arith.mulf %157, %315 : vector<8x256xf32>
    %317 = arith.addf %314, %316 : vector<8x256xf32>
    %318 = vector.broadcast %68 : f32 to vector<8x256xf32>
    %319 = arith.mulf %166, %318 : vector<8x256xf32>
    %320 = arith.addf %317, %319 : vector<8x256xf32>
    %321 = vector.broadcast %76 : f32 to vector<8x256xf32>
    %322 = arith.mulf %175, %321 : vector<8x256xf32>
    %323 = arith.addf %320, %322 : vector<8x256xf32>
    %324 = vector.broadcast %84 : f32 to vector<8x256xf32>
    %325 = arith.mulf %184, %324 : vector<8x256xf32>
    %326 = arith.addf %323, %325 : vector<8x256xf32>
    %327 = vector.broadcast %92 : f32 to vector<8x256xf32>
    %328 = arith.addf %326, %327 : vector<8x256xf32>
    %cst_15 = arith.constant 0.000000e+00 : f32
    %329 = vector.broadcast %cst_15 : f32 to vector<8x256xf32>
    %330 = arith.maximumf %328, %329 : vector<8x256xf32>
    %331 = vector.broadcast %100 : f32 to vector<8x256xf32>
    %332 = arith.mulf %330, %331 : vector<8x256xf32>
    %333 = arith.addf %303, %332 : vector<8x256xf32>
    %334 = vector.broadcast %29 : f32 to vector<8x256xf32>
    %335 = arith.mulf %121, %334 : vector<8x256xf32>
    %336 = vector.broadcast %37 : f32 to vector<8x256xf32>
    %337 = arith.mulf %130, %336 : vector<8x256xf32>
    %338 = arith.addf %335, %337 : vector<8x256xf32>
    %339 = vector.broadcast %45 : f32 to vector<8x256xf32>
    %340 = arith.mulf %139, %339 : vector<8x256xf32>
    %341 = arith.addf %338, %340 : vector<8x256xf32>
    %342 = vector.broadcast %53 : f32 to vector<8x256xf32>
    %343 = arith.mulf %148, %342 : vector<8x256xf32>
    %344 = arith.addf %341, %343 : vector<8x256xf32>
    %345 = vector.broadcast %61 : f32 to vector<8x256xf32>
    %346 = arith.mulf %157, %345 : vector<8x256xf32>
    %347 = arith.addf %344, %346 : vector<8x256xf32>
    %348 = vector.broadcast %69 : f32 to vector<8x256xf32>
    %349 = arith.mulf %166, %348 : vector<8x256xf32>
    %350 = arith.addf %347, %349 : vector<8x256xf32>
    %351 = vector.broadcast %77 : f32 to vector<8x256xf32>
    %352 = arith.mulf %175, %351 : vector<8x256xf32>
    %353 = arith.addf %350, %352 : vector<8x256xf32>
    %354 = vector.broadcast %85 : f32 to vector<8x256xf32>
    %355 = arith.mulf %184, %354 : vector<8x256xf32>
    %356 = arith.addf %353, %355 : vector<8x256xf32>
    %357 = vector.broadcast %93 : f32 to vector<8x256xf32>
    %358 = arith.addf %356, %357 : vector<8x256xf32>
    %cst_16 = arith.constant 0.000000e+00 : f32
    %359 = vector.broadcast %cst_16 : f32 to vector<8x256xf32>
    %360 = arith.maximumf %358, %359 : vector<8x256xf32>
    %361 = vector.broadcast %101 : f32 to vector<8x256xf32>
    %362 = arith.mulf %360, %361 : vector<8x256xf32>
    %363 = arith.addf %333, %362 : vector<8x256xf32>
    %364 = vector.broadcast %30 : f32 to vector<8x256xf32>
    %365 = arith.mulf %121, %364 : vector<8x256xf32>
    %366 = vector.broadcast %38 : f32 to vector<8x256xf32>
    %367 = arith.mulf %130, %366 : vector<8x256xf32>
    %368 = arith.addf %365, %367 : vector<8x256xf32>
    %369 = vector.broadcast %46 : f32 to vector<8x256xf32>
    %370 = arith.mulf %139, %369 : vector<8x256xf32>
    %371 = arith.addf %368, %370 : vector<8x256xf32>
    %372 = vector.broadcast %54 : f32 to vector<8x256xf32>
    %373 = arith.mulf %148, %372 : vector<8x256xf32>
    %374 = arith.addf %371, %373 : vector<8x256xf32>
    %375 = vector.broadcast %62 : f32 to vector<8x256xf32>
    %376 = arith.mulf %157, %375 : vector<8x256xf32>
    %377 = arith.addf %374, %376 : vector<8x256xf32>
    %378 = vector.broadcast %70 : f32 to vector<8x256xf32>
    %379 = arith.mulf %166, %378 : vector<8x256xf32>
    %380 = arith.addf %377, %379 : vector<8x256xf32>
    %381 = vector.broadcast %78 : f32 to vector<8x256xf32>
    %382 = arith.mulf %175, %381 : vector<8x256xf32>
    %383 = arith.addf %380, %382 : vector<8x256xf32>
    %384 = vector.broadcast %86 : f32 to vector<8x256xf32>
    %385 = arith.mulf %184, %384 : vector<8x256xf32>
    %386 = arith.addf %383, %385 : vector<8x256xf32>
    %387 = vector.broadcast %94 : f32 to vector<8x256xf32>
    %388 = arith.addf %386, %387 : vector<8x256xf32>
    %cst_17 = arith.constant 0.000000e+00 : f32
    %389 = vector.broadcast %cst_17 : f32 to vector<8x256xf32>
    %390 = arith.maximumf %388, %389 : vector<8x256xf32>
    %391 = vector.broadcast %102 : f32 to vector<8x256xf32>
    %392 = arith.mulf %390, %391 : vector<8x256xf32>
    %393 = arith.addf %363, %392 : vector<8x256xf32>
    %394 = vector.broadcast %31 : f32 to vector<8x256xf32>
    %395 = arith.mulf %121, %394 : vector<8x256xf32>
    %396 = vector.broadcast %39 : f32 to vector<8x256xf32>
    %397 = arith.mulf %130, %396 : vector<8x256xf32>
    %398 = arith.addf %395, %397 : vector<8x256xf32>
    %399 = vector.broadcast %47 : f32 to vector<8x256xf32>
    %400 = arith.mulf %139, %399 : vector<8x256xf32>
    %401 = arith.addf %398, %400 : vector<8x256xf32>
    %402 = vector.broadcast %55 : f32 to vector<8x256xf32>
    %403 = arith.mulf %148, %402 : vector<8x256xf32>
    %404 = arith.addf %401, %403 : vector<8x256xf32>
    %405 = vector.broadcast %63 : f32 to vector<8x256xf32>
    %406 = arith.mulf %157, %405 : vector<8x256xf32>
    %407 = arith.addf %404, %406 : vector<8x256xf32>
    %408 = vector.broadcast %71 : f32 to vector<8x256xf32>
    %409 = arith.mulf %166, %408 : vector<8x256xf32>
    %410 = arith.addf %407, %409 : vector<8x256xf32>
    %411 = vector.broadcast %79 : f32 to vector<8x256xf32>
    %412 = arith.mulf %175, %411 : vector<8x256xf32>
    %413 = arith.addf %410, %412 : vector<8x256xf32>
    %414 = vector.broadcast %87 : f32 to vector<8x256xf32>
    %415 = arith.mulf %184, %414 : vector<8x256xf32>
    %416 = arith.addf %413, %415 : vector<8x256xf32>
    %417 = vector.broadcast %95 : f32 to vector<8x256xf32>
    %418 = arith.addf %416, %417 : vector<8x256xf32>
    %cst_18 = arith.constant 0.000000e+00 : f32
    %419 = vector.broadcast %cst_18 : f32 to vector<8x256xf32>
    %420 = arith.maximumf %418, %419 : vector<8x256xf32>
    %421 = vector.broadcast %103 : f32 to vector<8x256xf32>
    %422 = arith.mulf %420, %421 : vector<8x256xf32>
    %423 = arith.addf %393, %422 : vector<8x256xf32>
    %424 = vector.broadcast %104 : f32 to vector<8x256xf32>
    %425 = arith.addf %423, %424 : vector<8x256xf32>
    %426 = arith.index_cast %106 : i32 to index
    %c0_19 = arith.constant 0 : index
    %427 = vector.load %arg3[%426, %c0_19] : memref<8x256xf32, #tpu.memory_space<vmem>>, vector<8x256xf32>
    tpu.vector_store %arg3[%426, %c0_19], %425 {strides = array<i32>} : memref<8x256xf32, #tpu.memory_space<vmem>>, vector<8x256xf32>,
    %c1_i32 = arith.constant 1 : i32
    return
  }
  func.func @transform_0(%arg0: i32) -> i32 {
    %c0_i32 = arith.constant 0 : i32
    %c0_i32_0 = arith.constant 0 : i32
    return %c0_i32 : i32
  }
  func.func @transform_1(%arg0: i32) -> (i32, i32, i32) {
    %c0_i32 = arith.constant 0 : i32
    %c0_i32_0 = arith.constant 0 : i32
    %c0_i32_1 = arith.constant 0 : i32
    return %c0_i32, %arg0, %c0_i32_0 : i32, i32, i32
  }
  func.func @transform_2(%arg0: i32) -> (i32, i32) {
    %c0_i32 = arith.constant 0 : i32
    %c0_i32_0 = arith.constant 0 : i32
    return %arg0, %c0_i32 : i32, i32
  }
}

</mosaic_0001>

<llo_original>
// kernel: mlp_forward.1
$region0: #{mlp_forward.1}
  #allocation0 [shape = 'u32[]', space=smem, size = 0x4, offset = 0x4, fixed_abs, tag = 'smem constant byte address 0x4 - core index']
  #allocation1 [shape = 'u32[144,128]{1,0:T(1,128)}', space=vmem, size = 0x12000, scoped, tag = 'internal scratch']
  %s0 = inlined_call_operand.vmem [shape: f32[128], index: 0, kind: input, shape index: {}]
  %s1 = inlined_call_operand.vmem [shape: f32[2,1,256], index: 1, kind: input, shape index: {}]
  %s2 = inlined_call_operand.vmem [shape: f32[1,256], index: 2, kind: output, shape index: {}]
  %s3 = sld [smem:[#allocation0]]
  $region86: #{mlp_forward.1} parent=0
    _
  %s5 = ssub.s32 1, %s3
  %s6 = scalar_select 0, %s5, %s3
  $region1: #{mlp_forward.1} parent=0
    #allocation2 [shape = 'u8[512]{0}', space=smem, size = 0x200, scoped, tag = 'input window, operand 0, single buffered']
    #allocation3 [shape = 's32[1]{0}', space=sflag, size = 0x4, scoped, tag = 'scoped memory for mlp_forward.1']
    #allocation4 [shape = 'u8[16384]{0}', space=vmem, size = 0x4000, scoped, tag = 'input window, operand 1, single buffered']
    #allocation5 [shape = 'u8[8192]{0}', space=vmem, size = 0x2000, scoped, tag = 'output window, operand 0, single buffered']
    %7 = vsyncpa [#allocation3], 0
    // Predicated region
    $region2: #{mlp_forward.1} parent=1 // pred_check
      _
    $region3: #{mlp_forward.1} parent=1 // pred_check_branch
      %9 = sbr.rel (0) target = $region5
    $region4: #{mlp_forward.1} parent=1 // pred_region
      %s11 = ssub.s32 16, 16
      %12 = vsyncadd [#allocation3], %s11
      %s14 = sshll.u32 %s0, 4
      %s15 = int_to_ptr.vmem [resolvable:$true] %s14
      %17 = dma.vmem_to_smem %s15, 16, [#allocation2], [#allocation3]
    $region5: #{mlp_forward.1} parent=1 // pred_fallthru
      _
    // Predicated region
    $region6: #{mlp_forward.1} parent=1 // pred_check
      _
    $region7: #{mlp_forward.1} parent=1 // pred_check_branch
      %19 = sbr.rel (0) target = $region9
    $region8: #{mlp_forward.1} parent=1 // pred_region
      // Predicated region
      $region10: #{mlp_forward.1} parent=8 // pred_check
        _
      $region11: #{mlp_forward.1} parent=8 // pred_check_branch
        %21 = sbr.rel (0) target = $region13
      $region12: #{mlp_forward.1} parent=8 // pred_region
        // Predicated region
        $region14: #{mlp_forward.1} parent=12 // pred_check
          _
        $region15: #{mlp_forward.1} parent=12 // pred_check_branch
          %23 = sbr.rel target = $region17
        $region16: #{mlp_forward.1} parent=12 // pred_region
          // Predicated region
          $region29: #{mlp_forward.1} parent=16 // pred_check
            _
          $region30: #{mlp_forward.1} parent=16 // pred_check_branch
            %41 = sbr.rel (0) target = $region32
          $region31: #{mlp_forward.1} parent=16 // pred_region
            %s43 = ssub.s32 4, 1
            loop: start=0, step=1, limit=1
            $region33: #{mlp_forward.1} parent=31 // loop_pre_header
              _
            $region34: #{mlp_forward.1} parent=31 // loop_header
              %s45 = sphi 0, %s49
              %p46 = scmp.ge.s32.totalorder %s45, 1
              %s50 = sphi %s1, %s1
              %s51 = sphi [#allocation4], [#allocation4]
            $region35: #{mlp_forward.1} parent=31 // loop_header_branch
              %48 = sbr.rel (%p46) target = $region39
            $region36: #{mlp_forward.1} parent=31 // loop_body
              %v52 = vld [vmem:[%s50] sm:%s43]
              %53 = vst [vmem:[%s51] sm:%s43] %v52
              %v54 = vld [vmem:[%s50 + $0x2] sm:%s43]
              %55 = vst [vmem:[%s51 + $0x10] sm:%s43] %v54
            $region37: #{mlp_forward.1} parent=31 // loop_footer
              %s49 = sadd.s32 1, %s45
            $region38: #{mlp_forward.1} parent=31 // loop_footer_branch
              %44 = sbr.rel target = $region34
            $region39: #{mlp_forward.1} parent=31 // loop_exit
              _
          $region32: #{mlp_forward.1} parent=16 // pred_fallthru
            _
        $region17: #{mlp_forward.1} parent=12 // pred_fallthru
          _
        // Predicated region
        $region18: #{mlp_forward.1} parent=12 // pred_check
          _
        $region19: #{mlp_forward.1} parent=12 // pred_check_branch
          %25 = sbr.rel (0) target = $region21
        $region20: #{mlp_forward.1} parent=12 // pred_region
          %s27 = ssub.s32 4, 1
          loop: start=0, step=1, limit=1
          $region22: #{mlp_forward.1} parent=20 // loop_pre_header
            _
          $region23: #{mlp_forward.1} parent=20 // loop_header
            %s29 = sphi 0, %s33
            %p30 = scmp.ge.s32.totalorder %s29, 1
            %s34 = sphi %s1, %s1
            %s35 = sphi [#allocation4], [#allocation4]
          $region24: #{mlp_forward.1} parent=20 // loop_header_branch
            %32 = sbr.rel (%p30) target = $region28
          $region25: #{mlp_forward.1} parent=20 // loop_body
            %v36 = vld [vmem:[%s34] sm:%s27]
            %37 = vst [vmem:[%s35] sm:%s27] %v36
            %v38 = vld [vmem:[%s34 + $0x2] sm:%s27]
            %39 = vst [vmem:[%s35 + $0x10] sm:%s27] %v38
          $region26: #{mlp_forward.1} parent=20 // loop_footer
            %s33 = sadd.s32 1, %s29
          $region27: #{mlp_forward.1} parent=20 // loop_footer_branch
            %28 = sbr.rel target = $region23
          $region28: #{mlp_forward.1} parent=20 // loop_exit
            _
        $region21: #{mlp_forward.1} parent=12 // pred_fallthru
          _
      $region13: #{mlp_forward.1} parent=8 // pred_fallthru
        _
      %56 = vnop
    $region9: #{mlp_forward.1} parent=1 // pred_fallthru
      _
    // Predicated region
    $region40: #{mlp_forward.1} parent=1 // pred_check
      _
    $region41: #{mlp_forward.1} parent=1 // pred_check_branch
      %58 = sbr.rel (0) target = $region43
    $region42: #{mlp_forward.1} parent=1 // pred_region
      %59 = dma.done [#allocation3], 16
    $region43: #{mlp_forward.1} parent=1 // pred_fallthru
      _
    // Predicated region
    $region44: #{mlp_forward.1} parent=1 // pred_check
      _
    $region45: #{mlp_forward.1} parent=1 // pred_check_branch
      %61 = sbr.rel (0) target = $region47
    $region46: #{mlp_forward.1} parent=1 // pred_region
      _
    $region47: #{mlp_forward.1} parent=1 // pred_fallthru
      _
    %62 = sfence
    %s63 = sld [smem:[#allocation2]]
    %s64 = sld [smem:[#allocation2 + $0x1]]
    %s65 = sld [smem:[#allocation2 + $0x2]]
    %s66 = sld [smem:[#allocation2 + $0x3]]
    %s67 = sld [smem:[#allocation2 + $0x4]]
    %s68 = sld [smem:[#allocation2 + $0x5]]
    %s69 = sld [smem:[#allocation2 + $0x6]]
    %s70 = sld [smem:[#allocation2 + $0x7]]
    %s71 = sld [smem:[#allocation2 + $0x8]]
    %s72 = sld [smem:[#allocation2 + $0x9]]
    %s73 = sld [smem:[#allocation2 + $0xa]]
    %s74 = sld [smem:[#allocation2 + $0xb]]
    %s75 = sld [smem:[#allocation2 + $0xc]]
    %s76 = sld [smem:[#allocation2 + $0xd]]
    %s77 = sld [smem:[#allocation2 + $0xe]]
    %s78 = sld [smem:[#allocation2 + $0xf]]
    %s79 = sld [smem:[#allocation2 + $0x10]]
    %s80 = sld [smem:[#allocation2 + $0x11]]
    %s81 = sld [smem:[#allocation2 + $0x12]]
    %s82 = sld [smem:[#allocation2 + $0x13]]
    %s83 = sld [smem:[#allocation2 + $0x14]]
    %s84 = sld [smem:[#allocation2 + $0x15]]
    %s85 = sld [smem:[#allocation2 + $0x16]]
    %s86 = sld [smem:[#allocation2 + $0x17]]
    %s87 = sld [smem:[#allocation2 + $0x18]]
    %s88 = sld [smem:[#allocation2 + $0x19]]
    %s89 = sld [smem:[#allocation2 + $0x1a]]
    %s90 = sld [smem:[#allocation2 + $0x1b]]
    %s91 = sld [smem:[#allocation2 + $0x1c]]
    %s92 = sld [smem:[#allocation2 + $0x1d]]
    %s93 = sld [smem:[#allocation2 + $0x1e]]
    %s94 = sld [smem:[#allocation2 + $0x1f]]
    %s95 = sld [smem:[#allocation2 + $0x20]]
    %s96 = sld [smem:[#allocation2 + $0x21]]
    %s97 = sld [smem:[#allocation2 + $0x22]]
    %s98 = sld [smem:[#allocation2 + $0x23]]
    %s99 = sld [smem:[#allocation2 + $0x24]]
    %s100 = sld [smem:[#allocation2 + $0x25]]
    %s101 = sld [smem:[#allocation2 + $0x26]]
    %s102 = sld [smem:[#allocation2 + $0x27]]
    %s103 = sld [smem:[#allocation2 + $0x28]]
    %s104 = sld [smem:[#allocation2 + $0x29]]
    %s105 = sld [smem:[#allocation2 + $0x2a]]
    %s106 = sld [smem:[#allocation2 + $0x2b]]
    %s107 = sld [smem:[#allocation2 + $0x2c]]
    %s108 = sld [smem:[#allocation2 + $0x2d]]
    %s109 = sld [smem:[#allocation2 + $0x2e]]
    %s110 = sld [smem:[#allocation2 + $0x2f]]
    %s111 = sld [smem:[#allocation2 + $0x30]]
    %s112 = sld [smem:[#allocation2 + $0x31]]
    %s113 = sld [smem:[#allocation2 + $0x32]]
    %s114 = sld [smem:[#allocation2 + $0x33]]
    %s115 = sld [smem:[#allocation2 + $0x34]]
    %s116 = sld [smem:[#allocation2 + $0x35]]
    %s117 = sld [smem:[#allocation2 + $0x36]]
    %s118 = sld [smem:[#allocation2 + $0x37]]
    %s119 = sld [smem:[#allocation2 + $0x38]]
    %s120 = sld [smem:[#allocation2 + $0x39]]
    %s121 = sld [smem:[#allocation2 + $0x3a]]
    %s122 = sld [smem:[#allocation2 + $0x3b]]
    %s123 = sld [smem:[#allocation2 + $0x3c]]
    %s124 = sld [smem:[#allocation2 + $0x3d]]
    %s125 = sld [smem:[#allocation2 + $0x3e]]
    %s126 = sld [smem:[#allocation2 + $0x3f]]
    %s127 = sld [smem:[#allocation2 + $0x40]]
    %s128 = sld [smem:[#allocation2 + $0x41]]
    %s129 = sld [smem:[#allocation2 + $0x42]]
    %s130 = sld [smem:[#allocation2 + $0x43]]
    %s131 = sld [smem:[#allocation2 + $0x44]]
    %s132 = sld [smem:[#allocation2 + $0x45]]
    %s133 = sld [smem:[#allocation2 + $0x46]]
    %s134 = sld [smem:[#allocation2 + $0x47]]
    %s135 = sld [smem:[#allocation2 + $0x48]]
    %s136 = sld [smem:[#allocation2 + $0x49]]
    %s137 = sld [smem:[#allocation2 + $0x4a]]
    %s138 = sld [smem:[#allocation2 + $0x4b]]
    %s139 = sld [smem:[#allocation2 + $0x4c]]
    %s140 = sld [smem:[#allocation2 + $0x4d]]
    %s141 = sld [smem:[#allocation2 + $0x4e]]
    %s142 = sld [smem:[#allocation2 + $0x4f]]
    %s143 = sld [smem:[#allocation2 + $0x50]]
    %s144 = sld [smem:[#allocation2 + $0x51]]
    %s145 = sld [smem:[#allocation2 + $0x52]]
    %s146 = sld [smem:[#allocation2 + $0x53]]
    %s147 = sld [smem:[#allocation2 + $0x54]]
    %s148 = sld [smem:[#allocation2 + $0x55]]
    %s149 = sld [smem:[#allocation2 + $0x56]]
    %s150 = sld [smem:[#allocation2 + $0x57]]
    %s151 = sld [smem:[#allocation2 + $0x58]]
    %s152 = sld [smem:[#allocation2 + $0x59]]
    %s153 = sld [smem:[#allocation2 + $0x5a]]
    %s154 = sld [smem:[#allocation2 + $0x5b]]
    %s155 = sld [smem:[#allocation2 + $0x5c]]
    %s156 = sld [smem:[#allocation2 + $0x5d]]
    %s157 = sld [smem:[#allocation2 + $0x5e]]
    %s158 = sld [smem:[#allocation2 + $0x5f]]
    %s159 = sld [smem:[#allocation2 + $0x60]]
    %s160 = sld [smem:[#allocation2 + $0x61]]
    %s161 = sld [smem:[#allocation2 + $0x62]]
    %s162 = sld [smem:[#allocation2 + $0x63]]
    %s163 = sld [smem:[#allocation2 + $0x64]]
    %s164 = sld [smem:[#allocation2 + $0x65]]
    %s165 = sld [smem:[#allocation2 + $0x66]]
    %s166 = sld [smem:[#allocation2 + $0x67]]
    %s167 = sld [smem:[#allocation2 + $0x68]]
    %s168 = smul.u32 0, 2
    %s169 = scalar_lea.vmem [#allocation4], %s168
    %v170 = vld [vmem:[%s169] sm:$0x3]
    %v171 = vld [vmem:[%s169 + $0x2] sm:$0x3]
    %v172 = vld [vmem:[%s169 + $0x4] sm:$0x3]
    %v173 = vld [vmem:[%s169 + $0x6] sm:$0x3]
    %v174 = vld [vmem:[%s169 + $0x8] sm:$0x3]
    %v175 = vld [vmem:[%s169 + $0xa] sm:$0x3]
    %v176 = vld [vmem:[%s169 + $0xc] sm:$0x3]
    %v177 = vld [vmem:[%s169 + $0xe] sm:$0x3]
    %s178 = sadd.s32 %s168, 16
    %s179 = scalar_lea.vmem [#allocation4], %s178
    %v180 = vld [vmem:[%s179] sm:$0x3]
    %v181 = vld [vmem:[%s179 + $0x2] sm:$0x3]
    %v182 = vld [vmem:[%s179 + $0x4] sm:$0x3]
    %v183 = vld [vmem:[%s179 + $0x6] sm:$0x3]
    %v184 = vld [vmem:[%s179 + $0x8] sm:$0x3]
    %v185 = vld [vmem:[%s179 + $0xa] sm:$0x3]
    %v186 = vld [vmem:[%s179 + $0xc] sm:$0x3]
    %v187 = vld [vmem:[%s179 + $0xe] sm:$0x3]
    %v188 = vstv %s63
    %v189 = vmul.f32 %v188, %v170
    %v190 = vmul.f32 %v188, %v171
    %v191 = vmul.f32 %v188, %v172
    %v192 = vmul.f32 %v188, %v173
    %v193 = vmul.f32 %v188, %v174
    %v194 = vmul.f32 %v188, %v175
    %v195 = vmul.f32 %v188, %v176
    %v196 = vmul.f32 %v188, %v177
    %v197 = vstv %s71
    %v198 = vmul.f32 %v197, %v180
    %v199 = vmul.f32 %v197, %v181
    %v200 = vmul.f32 %v197, %v182
    %v201 = vmul.f32 %v197, %v183
    %v202 = vmul.f32 %v197, %v184
    %v203 = vmul.f32 %v197, %v185
    %v204 = vmul.f32 %v197, %v186
    %v205 = vmul.f32 %v197, %v187
    %v206 = vadd.f32 %v189, %v198
    %v207 = vadd.f32 %v190, %v199
    %v208 = vadd.f32 %v191, %v200
    %v209 = vadd.f32 %v192, %v201
    %v210 = vadd.f32 %v193, %v202
    %v211 = vadd.f32 %v194, %v203
    %v212 = vadd.f32 %v195, %v204
    %v213 = vadd.f32 %v196, %v205
    %v214 = vstv %s79
    %v215 = vadd.f32 %v206, %v214
    %v216 = vadd.f32 %v207, %v214
    %v217 = vadd.f32 %v208, %v214
    %v218 = vadd.f32 %v209, %v214
    %v219 = vadd.f32 %v210, %v214
    %v220 = vadd.f32 %v211, %v214
    %v221 = vadd.f32 %v212, %v214
    %v222 = vadd.f32 %v213, %v214
    %v223 = vmax.f32 %v215, 0.0
    %v224 = vmax.f32 %v216, 0.0
    %v225 = vmax.f32 %v217, 0.0
    %v226 = vmax.f32 %v218, 0.0
    %v227 = vmax.f32 %v219, 0.0
    %v228 = vmax.f32 %v220, 0.0
    %v229 = vmax.f32 %v221, 0.0
    %v230 = vmax.f32 %v222, 0.0
    %v231 = vstv %s64
    %v232 = vmul.f32 %v231, %v170
    %v233 = vmul.f32 %v231, %v171
    %v234 = vmul.f32 %v231, %v172
    %v235 = vmul.f32 %v231, %v173
    %v236 = vmul.f32 %v231, %v174
    %v237 = vmul.f32 %v231, %v175
    %v238 = vmul.f32 %v231, %v176
    %v239 = vmul.f32 %v231, %v177
    %v240 = vstv %s72
    %v241 = vmul.f32 %v240, %v180
    %v242 = vmul.f32 %v240, %v181
    %v243 = vmul.f32 %v240, %v182
    %v244 = vmul.f32 %v240, %v183
    %v245 = vmul.f32 %v240, %v184
    %v246 = vmul.f32 %v240, %v185
    %v247 = vmul.f32 %v240, %v186
    %v248 = vmul.f32 %v240, %v187
    %v249 = vadd.f32 %v232, %v241
    %v250 = vadd.f32 %v233, %v242
    %v251 = vadd.f32 %v234, %v243
    %v252 = vadd.f32 %v235, %v244
    %v253 = vadd.f32 %v236, %v245
    %v254 = vadd.f32 %v237, %v246
    %v255 = vadd.f32 %v238, %v247
    %v256 = vadd.f32 %v239, %v248
    %v257 = vstv %s80
    %v258 = vadd.f32 %v249, %v257
    %v259 = vadd.f32 %v250, %v257
    %v260 = vadd.f32 %v251, %v257
    %v261 = vadd.f32 %v252, %v257
    %v262 = vadd.f32 %v253, %v257
    %v263 = vadd.f32 %v254, %v257
    %v264 = vadd.f32 %v255, %v257
    %v265 = vadd.f32 %v256, %v257
    %v266 = vmax.f32 %v258, 0.0
    %v267 = vmax.f32 %v259, 0.0
    %v268 = vmax.f32 %v260, 0.0
    %v269 = vmax.f32 %v261, 0.0
    %v270 = vmax.f32 %v262, 0.0
    %v271 = vmax.f32 %v263, 0.0
    %v272 = vmax.f32 %v264, 0.0
    %v273 = vmax.f32 %v265, 0.0
    %v274 = vstv %s65
    %v275 = vmul.f32 %v274, %v170
    %v276 = vmul.f32 %v274, %v171
    %v277 = vmul.f32 %v274, %v172
    %v278 = vmul.f32 %v274, %v173
    %v279 = vmul.f32 %v274, %v174
    %v280 = vmul.f32 %v274, %v175
    %v281 = vmul.f32 %v274, %v176
    %v282 = vmul.f32 %v274, %v177
    %v283 = vstv %s73
    %v284 = vmul.f32 %v283, %v180
    %v285 = vmul.f32 %v283, %v181
    %v286 = vmul.f32 %v283, %v182
    %v287 = vmul.f32 %v283, %v183
    %v288 = vmul.f32 %v283, %v184
    %v289 = vmul.f32 %v283, %v185
    %v290 = vmul.f32 %v283, %v186
    %v291 = vmul.f32 %v283, %v187
    %v292 = vadd.f32 %v275, %v284
    %v293 = vadd.f32 %v276, %v285
    %v294 = vadd.f32 %v277, %v286
    %v295 = vadd.f32 %v278, %v287
    %v296 = vadd.f32 %v279, %v288
    %v297 = vadd.f32 %v280, %v289
    %v298 = vadd.f32 %v281, %v290
    %v299 = vadd.f32 %v282, %v291
    %v300 = vstv %s81
    %v301 = vadd.f32 %v292, %v300
    %v302 = vadd.f32 %v293, %v300
    %v303 = vadd.f32 %v294, %v300
    %v304 = vadd.f32 %v295, %v300
    %v305 = vadd.f32 %v296, %v300
    %v306 = vadd.f32 %v297, %v300
    %v307 = vadd.f32 %v298, %v300
    %v308 = vadd.f32 %v299, %v300
    %v309 = vmax.f32 %v301, 0.0
    %v310 = vmax.f32 %v302, 0.0
    %v311 = vmax.f32 %v303, 0.0
    %v312 = vmax.f32 %v304, 0.0
    %v313 = vmax.f32 %v305, 0.0
    %v314 = vmax.f32 %v306, 0.0
    %v315 = vmax.f32 %v307, 0.0
    %v316 = vmax.f32 %v308, 0.0
    %v317 = vstv %s66
    %v318 = vmul.f32 %v317, %v170
    %v319 = vmul.f32 %v317, %v171
    %v320 = vmul.f32 %v317, %v172
    %v321 = vmul.f32 %v317, %v173
    %v322 = vmul.f32 %v317, %v174
    %v323 = vmul.f32 %v317, %v175
    %v324 = vmul.f32 %v317, %v176
    %v325 = vmul.f32 %v317, %v177
    %v326 = vstv %s74
    %v327 = vmul.f32 %v326, %v180
    %v328 = vmul.f32 %v326, %v181
    %v329 = vmul.f32 %v326, %v182
    %v330 = vmul.f32 %v326, %v183
    %v331 = vmul.f32 %v326, %v184
    %v332 = vmul.f32 %v326, %v185
    %v333 = vmul.f32 %v326, %v186
    %v334 = vmul.f32 %v326, %v187
    %v335 = vadd.f32 %v318, %v327
    %v336 = vadd.f32 %v319, %v328
    %v337 = vadd.f32 %v320, %v329
    %v338 = vadd.f32 %v321, %v330
    %v339 = vadd.f32 %v322, %v331
    %v340 = vadd.f32 %v323, %v332
    %v341 = vadd.f32 %v324, %v333
    %v342 = vadd.f32 %v325, %v334
    %v343 = vstv %s82
    %v344 = vadd.f32 %v335, %v343
    %v345 = vadd.f32 %v336, %v343
    %v346 = vadd.f32 %v337, %v343
    %v347 = vadd.f32 %v338, %v343
    %v348 = vadd.f32 %v339, %v343
    %v349 = vadd.f32 %v340, %v343
    %v350 = vadd.f32 %v341, %v343
    %v351 = vadd.f32 %v342, %v343
    %v352 = vmax.f32 %v344, 0.0
    %v353 = vmax.f32 %v345, 0.0
    %v354 = vmax.f32 %v346, 0.0
    %v355 = vmax.f32 %v347, 0.0
    %v356 = vmax.f32 %v348, 0.0
    %v357 = vmax.f32 %v349, 0.0
    %v358 = vmax.f32 %v350, 0.0
    %v359 = vmax.f32 %v351, 0.0
    %v360 = vstv %s67
    %v361 = vmul.f32 %v360, %v170
    %v362 = vmul.f32 %v360, %v171
    %v363 = vmul.f32 %v360, %v172
    %v364 = vmul.f32 %v360, %v173
    %v365 = vmul.f32 %v360, %v174
    %v366 = vmul.f32 %v360, %v175
    %v367 = vmul.f32 %v360, %v176
    %v368 = vmul.f32 %v360, %v177
    %v369 = vstv %s75
    %v370 = vmul.f32 %v369, %v180
    %v371 = vmul.f32 %v369, %v181
    %v372 = vmul.f32 %v369, %v182
    %v373 = vmul.f32 %v369, %v183
    %v374 = vmul.f32 %v369, %v184
    %v375 = vmul.f32 %v369, %v185
    %v376 = vmul.f32 %v369, %v186
    %v377 = vmul.f32 %v369, %v187
    %v378 = vadd.f32 %v361, %v370
    %v379 = vadd.f32 %v362, %v371
    %v380 = vadd.f32 %v363, %v372
    %v381 = vadd.f32 %v364, %v373
    %v382 = vadd.f32 %v365, %v374
    %v383 = vadd.f32 %v366, %v375
    %v384 = vadd.f32 %v367, %v376
    %v385 = vadd.f32 %v368, %v377
    %v386 = vstv %s83
    %v387 = vadd.f32 %v378, %v386
    %v388 = vadd.f32 %v379, %v386
    %v389 = vadd.f32 %v380, %v386
    %v390 = vadd.f32 %v381, %v386
    %v391 = vadd.f32 %v382, %v386
    %v392 = vadd.f32 %v383, %v386
    %v393 = vadd.f32 %v384, %v386
    %v394 = vadd.f32 %v385, %v386
    %v395 = vmax.f32 %v387, 0.0
    %v396 = vmax.f32 %v388, 0.0
    %v397 = vmax.f32 %v389, 0.0
    %v398 = vmax.f32 %v390, 0.0
    %v399 = vmax.f32 %v391, 0.0
    %v400 = vmax.f32 %v392, 0.0
    %v401 = vmax.f32 %v393, 0.0
    %v402 = vmax.f32 %v394, 0.0
    %v403 = vstv %s68
    %v404 = vmul.f32 %v403, %v170
    %v405 = vmul.f32 %v403, %v171
    %v406 = vmul.f32 %v403, %v172
    %v407 = vmul.f32 %v403, %v173
    %v408 = vmul.f32 %v403, %v174
    %v409 = vmul.f32 %v403, %v175
    %v410 = vmul.f32 %v403, %v176
    %v411 = vmul.f32 %v403, %v177
    %v412 = vstv %s76
    %v413 = vmul.f32 %v412, %v180
    %v414 = vmul.f32 %v412, %v181
    %v415 = vmul.f32 %v412, %v182
    %v416 = vmul.f32 %v412, %v183
    %v417 = vmul.f32 %v412, %v184
    %v418 = vmul.f32 %v412, %v185
    %v419 = vmul.f32 %v412, %v186
    %v420 = vmul.f32 %v412, %v187
    %v421 = vadd.f32 %v404, %v413
    %v422 = vadd.f32 %v405, %v414
    %v423 = vadd.f32 %v406, %v415
    %v424 = vadd.f32 %v407, %v416
    %v425 = vadd.f32 %v408, %v417
    %v426 = vadd.f32 %v409, %v418
    %v427 = vadd.f32 %v410, %v419
    %v428 = vadd.f32 %v411, %v420
    %v429 = vstv %s84
    %v430 = vadd.f32 %v421, %v429
    %v431 = vadd.f32 %v422, %v429
    %v432 = vadd.f32 %v423, %v429
    %v433 = vadd.f32 %v424, %v429
    %v434 = vadd.f32 %v425, %v429
    %v435 = vadd.f32 %v426, %v429
    %v436 = vadd.f32 %v427, %v429
    %v437 = vadd.f32 %v428, %v429
    %v438 = vmax.f32 %v430, 0.0
    %v439 = vmax.f32 %v431, 0.0
    %v440 = vmax.f32 %v432, 0.0
    %v441 = vmax.f32 %v433, 0.0
    %v442 = vmax.f32 %v434, 0.0
    %v443 = vmax.f32 %v435, 0.0
    %v444 = vmax.f32 %v436, 0.0
    %v445 = vmax.f32 %v437, 0.0
    %v446 = vstv %s69
    %v447 = vmul.f32 %v446, %v170
    %v448 = vmul.f32 %v446, %v171
    %v449 = vmul.f32 %v446, %v172
    %v450 = vmul.f32 %v446, %v173
    %v451 = vmul.f32 %v446, %v174
    %v452 = vmul.f32 %v446, %v175
    %v453 = vmul.f32 %v446, %v176
    %v454 = vmul.f32 %v446, %v177
    %v455 = vstv %s77
    %v456 = vmul.f32 %v455, %v180
    %v457 = vmul.f32 %v455, %v181
    %v458 = vmul.f32 %v455, %v182
    %v459 = vmul.f32 %v455, %v183
    %v460 = vmul.f32 %v455, %v184
    %v461 = vmul.f32 %v455, %v185
    %v462 = vmul.f32 %v455, %v186
    %v463 = vmul.f32 %v455, %v187
    %v464 = vadd.f32 %v447, %v456
    %v465 = vadd.f32 %v448, %v457
    %v466 = vadd.f32 %v449, %v458
    %v467 = vadd.f32 %v450, %v459
    %v468 = vadd.f32 %v451, %v460
    %v469 = vadd.f32 %v452, %v461
    %v470 = vadd.f32 %v453, %v462
    %v471 = vadd.f32 %v454, %v463
    %v472 = vstv %s85
    %v473 = vadd.f32 %v464, %v472
    %v474 = vadd.f32 %v465, %v472
    %v475 = vadd.f32 %v466, %v472
    %v476 = vadd.f32 %v467, %v472
    %v477 = vadd.f32 %v468, %v472
    %v478 = vadd.f32 %v469, %v472
    %v479 = vadd.f32 %v470, %v472
    %v480 = vadd.f32 %v471, %v472
    %v481 = vmax.f32 %v473, 0.0
    %v482 = vmax.f32 %v474, 0.0
    %v483 = vmax.f32 %v475, 0.0
    %v484 = vmax.f32 %v476, 0.0
    %v485 = vmax.f32 %v477, 0.0
    %v486 = vmax.f32 %v478, 0.0
    %v487 = vmax.f32 %v479, 0.0
    %v488 = vmax.f32 %v480, 0.0
    %v489 = vstv %s70
    %v490 = vmul.f32 %v489, %v170
    %v491 = vmul.f32 %v489, %v171
    %v492 = vmul.f32 %v489, %v172
    %v493 = vmul.f32 %v489, %v173
    %v494 = vmul.f32 %v489, %v174
    %v495 = vmul.f32 %v489, %v175
    %v496 = vmul.f32 %v489, %v176
    %v497 = vmul.f32 %v489, %v177
    %v498 = vstv %s78
    %v499 = vmul.f32 %v498, %v180
    %v500 = vmul.f32 %v498, %v181
    %v501 = vmul.f32 %v498, %v182
    %v502 = vmul.f32 %v498, %v183
    %v503 = vmul.f32 %v498, %v184
    %v504 = vmul.f32 %v498, %v185
    %v505 = vmul.f32 %v498, %v186
    %v506 = vmul.f32 %v498, %v187
    %v507 = vadd.f32 %v490, %v499
    %v508 = vadd.f32 %v491, %v500
    %v509 = vadd.f32 %v492, %v501
    %v510 = vadd.f32 %v493, %v502
    %v511 = vadd.f32 %v494, %v503
    %v512 = vadd.f32 %v495, %v504
    %v513 = vadd.f32 %v496, %v505
    %v514 = vadd.f32 %v497, %v506
    %v515 = vstv %s86
    %v516 = vadd.f32 %v507, %v515
    %v517 = vadd.f32 %v508, %v515
    %v518 = vadd.f32 %v509, %v515
    %v519 = vadd.f32 %v510, %v515
    %v520 = vadd.f32 %v511, %v515
    %v521 = vadd.f32 %v512, %v515
    %v522 = vadd.f32 %v513, %v515
    %v523 = vadd.f32 %v514, %v515
    %v524 = vmax.f32 %v516, 0.0
    %v525 = vmax.f32 %v517, 0.0
    %v526 = vmax.f32 %v518, 0.0
    %v527 = vmax.f32 %v519, 0.0
    %v528 = vmax.f32 %v520, 0.0
    %v529 = vmax.f32 %v521, 0.0
    %v530 = vmax.f32 %v522, 0.0
    %v531 = vmax.f32 %v523, 0.0
    %v532 = vstv %s87
    %v533 = vmul.f32 %v223, %v532
    %v534 = vmul.f32 %v224, %v532
    %v535 = vmul.f32 %v225, %v532
    %v536 = vmul.f32 %v226, %v532
    %v537 = vmul.f32 %v227, %v532
    %v538 = vmul.f32 %v228, %v532
    %v539 = vmul.f32 %v229, %v532
    %v540 = vmul.f32 %v230, %v532
    %v541 = vstv %s95
    %v542 = vmul.f32 %v266, %v541
    %v543 = vmul.f32 %v267, %v541
    %v544 = vmul.f32 %v268, %v541
    %v545 = vmul.f32 %v269, %v541
    %v546 = vmul.f32 %v270, %v541
    %v547 = vmul.f32 %v271, %v541
    %v548 = vmul.f32 %v272, %v541
    %v549 = vmul.f32 %v273, %v541
    %v550 = vadd.f32 %v533, %v542
    %v551 = vadd.f32 %v534, %v543
    %v552 = vadd.f32 %v535, %v544
    %v553 = vadd.f32 %v536, %v545
    %v554 = vadd.f32 %v537, %v546
    %v555 = vadd.f32 %v538, %v547
    %v556 = vadd.f32 %v539, %v548
    %v557 = vadd.f32 %v540, %v549
    %v558 = vstv %s103
    %v559 = vmul.f32 %v309, %v558
    %v560 = vmul.f32 %v310, %v558
    %v561 = vmul.f32 %v311, %v558
    %v562 = vmul.f32 %v312, %v558
    %v563 = vmul.f32 %v313, %v558
    %v564 = vmul.f32 %v314, %v558
    %v565 = vmul.f32 %v315, %v558
    %v566 = vmul.f32 %v316, %v558
    %v567 = vadd.f32 %v550, %v559
    %v568 = vadd.f32 %v551, %v560
    %v569 = vadd.f32 %v552, %v561
    %v570 = vadd.f32 %v553, %v562
    %v571 = vadd.f32 %v554, %v563
    %v572 = vadd.f32 %v555, %v564
    %v573 = vadd.f32 %v556, %v565
    %v574 = vadd.f32 %v557, %v566
    %v575 = vstv %s111
    %v576 = vmul.f32 %v352, %v575
    %v577 = vmul.f32 %v353, %v575
    %v578 = vmul.f32 %v354, %v575
    %v579 = vmul.f32 %v355, %v575
    %v580 = vmul.f32 %v356, %v575
    %v581 = vmul.f32 %v357, %v575
    %v582 = vmul.f32 %v358, %v575
    %v583 = vmul.f32 %v359, %v575
    %v584 = vadd.f32 %v567, %v576
    %v585 = vadd.f32 %v568, %v577
    %v586 = vadd.f32 %v569, %v578
    %v587 = vadd.f32 %v570, %v579
    %v588 = vadd.f32 %v571, %v580
    %v589 = vadd.f32 %v572, %v581
    %v590 = vadd.f32 %v573, %v582
    %v591 = vadd.f32 %v574, %v583
    %v592 = vstv %s119
    %v593 = vmul.f32 %v395, %v592
    %v594 = vmul.f32 %v396, %v592
    %v595 = vmul.f32 %v397, %v592
    %v596 = vmul.f32 %v398, %v592
    %v597 = vmul.f32 %v399, %v592
    %v598 = vmul.f32 %v400, %v592
    %v599 = vmul.f32 %v401, %v592
    %v600 = vmul.f32 %v402, %v592
    %v601 = vadd.f32 %v584, %v593
    %v602 = vadd.f32 %v585, %v594
    %v603 = vadd.f32 %v586, %v595
    %v604 = vadd.f32 %v587, %v596
    %v605 = vadd.f32 %v588, %v597
    %v606 = vadd.f32 %v589, %v598
    %v607 = vadd.f32 %v590, %v599
    %v608 = vadd.f32 %v591, %v600
    %v609 = vstv %s127
    %v610 = vmul.f32 %v438, %v609
    %v611 = vmul.f32 %v439, %v609
    %v612 = vmul.f32 %v440, %v609
    %v613 = vmul.f32 %v441, %v609
    %v614 = vmul.f32 %v442, %v609
    %v615 = vmul.f32 %v443, %v609
    %v616 = vmul.f32 %v444, %v609
    %v617 = vmul.f32 %v445, %v609
    %v618 = vadd.f32 %v601, %v610
    %v619 = vadd.f32 %v602, %v611
    %v620 = vadd.f32 %v603, %v612
    %v621 = vadd.f32 %v604, %v613
    %v622 = vadd.f32 %v605, %v614
    %v623 = vadd.f32 %v606, %v615
    %v624 = vadd.f32 %v607, %v616
    %v625 = vadd.f32 %v608, %v617
    %v626 = vstv %s135
    %v627 = vmul.f32 %v481, %v626
    %v628 = vmul.f32 %v482, %v626
    %v629 = vmul.f32 %v483, %v626
    %v630 = vmul.f32 %v484, %v626
    %v631 = vmul.f32 %v485, %v626
    %v632 = vmul.f32 %v486, %v626
    %v633 = vmul.f32 %v487, %v626
    %v634 = vmul.f32 %v488, %v626
    %v635 = vadd.f32 %v618, %v627
    %v636 = vadd.f32 %v619, %v628
    %v637 = vadd.f32 %v620, %v629
    %v638 = vadd.f32 %v621, %v630
    %v639 = vadd.f32 %v622, %v631
    %v640 = vadd.f32 %v623, %v632
    %v641 = vadd.f32 %v624, %v633
    %v642 = vadd.f32 %v625, %v634
    %v643 = vstv %s143
    %v644 = vmul.f32 %v524, %v643
    %v645 = vmul.f32 %v525, %v643
    %v646 = vmul.f32 %v526, %v643
    %v647 = vmul.f32 %v527, %v643
    %v648 = vmul.f32 %v528, %v643
    %v649 = vmul.f32 %v529, %v643
    %v650 = vmul.f32 %v530, %v643
    %v651 = vmul.f32 %v531, %v643
    %v652 = vadd.f32 %v635, %v644
    %v653 = vadd.f32 %v636, %v645
    %v654 = vadd.f32 %v637, %v646
    %v655 = vadd.f32 %v638, %v647
    %v656 = vadd.f32 %v639, %v648
    %v657 = vadd.f32 %v640, %v649
    %v658 = vadd.f32 %v641, %v650
    %v659 = vadd.f32 %v642, %v651
    %v660 = vstv %s151
    %v661 = vadd.f32 %v652, %v660
    %v662 = vadd.f32 %v653, %v660
    %v663 = vadd.f32 %v654, %v660
    %v664 = vadd.f32 %v655, %v660
    %v665 = vadd.f32 %v656, %v660
    %v666 = vadd.f32 %v657, %v660
    %v667 = vadd.f32 %v658, %v660
    %v668 = vadd.f32 %v659, %v660
    %v669 = vmax.f32 %v661, 0.0
    %v670 = vmax.f32 %v662, 0.0
    %v671 = vmax.f32 %v663, 0.0
    %v672 = vmax.f32 %v664, 0.0
    %v673 = vmax.f32 %v665, 0.0
    %v674 = vmax.f32 %v666, 0.0
    %v675 = vmax.f32 %v667, 0.0
    %v676 = vmax.f32 %v668, 0.0
    %v677 = vstv %s159
    %v678 = vmul.f32 %v669, %v677
    %v679 = vmul.f32 %v670, %v677
    %v680 = vmul.f32 %v671, %v677
    %v681 = vmul.f32 %v672, %v677
    %v682 = vmul.f32 %v673, %v677
    %v683 = vmul.f32 %v674, %v677
    %v684 = vmul.f32 %v675, %v677
    %v685 = vmul.f32 %v676, %v677
    %v686 = vstv %s88
    %v687 = vmul.f32 %v223, %v686
    %v688 = vmul.f32 %v224, %v686
    %v689 = vmul.f32 %v225, %v686
    %v690 = vmul.f32 %v226, %v686
    %v691 = vmul.f32 %v227, %v686
    %v692 = vmul.f32 %v228, %v686
    %v693 = vmul.f32 %v229, %v686
    %v694 = vmul.f32 %v230, %v686
    %v695 = vstv %s96
    %v696 = vmul.f32 %v266, %v695
    %v697 = vmul.f32 %v267, %v695
    %v698 = vmul.f32 %v268, %v695
    %v699 = vmul.f32 %v269, %v695
    %v700 = vmul.f32 %v270, %v695
    %v701 = vmul.f32 %v271, %v695
    %v702 = vmul.f32 %v272, %v695
    %v703 = vmul.f32 %v273, %v695
    %v704 = vadd.f32 %v687, %v696
    %v705 = vadd.f32 %v688, %v697
    %v706 = vadd.f32 %v689, %v698
    %v707 = vadd.f32 %v690, %v699
    %v708 = vadd.f32 %v691, %v700
    %v709 = vadd.f32 %v692, %v701
    %v710 = vadd.f32 %v693, %v702
    %v711 = vadd.f32 %v694, %v703
    %v712 = vstv %s104
    %v713 = vmul.f32 %v309, %v712
    %v714 = vmul.f32 %v310, %v712
    %v715 = vmul.f32 %v311, %v712
    %v716 = vmul.f32 %v312, %v712
    %v717 = vmul.f32 %v313, %v712
    %v718 = vmul.f32 %v314, %v712
    %v719 = vmul.f32 %v315, %v712
    %v720 = vmul.f32 %v316, %v712
    %v721 = vadd.f32 %v704, %v713
    %v722 = vadd.f32 %v705, %v714
    %v723 = vadd.f32 %v706, %v715
    %v724 = vadd.f32 %v707, %v716
    %v725 = vadd.f32 %v708, %v717
    %v726 = vadd.f32 %v709, %v718
    %v727 = vadd.f32 %v710, %v719
    %v728 = vadd.f32 %v711, %v720
    %v729 = vstv %s112
    %v730 = vmul.f32 %v352, %v729
    %v731 = vmul.f32 %v353, %v729
    %v732 = vmul.f32 %v354, %v729
    %v733 = vmul.f32 %v355, %v729
    %v734 = vmul.f32 %v356, %v729
    %v735 = vmul.f32 %v357, %v729
    %v736 = vmul.f32 %v358, %v729
    %v737 = vmul.f32 %v359, %v729
    %v738 = vadd.f32 %v721, %v730
    %v739 = vadd.f32 %v722, %v731
    %v740 = vadd.f32 %v723, %v732
    %v741 = vadd.f32 %v724, %v733
    %v742 = vadd.f32 %v725, %v734
    %v743 = vadd.f32 %v726, %v735
    %v744 = vadd.f32 %v727, %v736
    %v745 = vadd.f32 %v728, %v737
    %v746 = vstv %s120
    %v747 = vmul.f32 %v395, %v746
    %v748 = vmul.f32 %v396, %v746
    %v749 = vmul.f32 %v397, %v746
    %v750 = vmul.f32 %v398, %v746
    %v751 = vmul.f32 %v399, %v746
    %v752 = vmul.f32 %v400, %v746
    %v753 = vmul.f32 %v401, %v746
    %v754 = vmul.f32 %v402, %v746
    %v755 = vadd.f32 %v738, %v747
    %v756 = vadd.f32 %v739, %v748
    %v757 = vadd.f32 %v740, %v749
    %v758 = vadd.f32 %v741, %v750
    %v759 = vadd.f32 %v742, %v751
    %v760 = vadd.f32 %v743, %v752
    %v761 = vadd.f32 %v744, %v753
    %v762 = vadd.f32 %v745, %v754
    %v763 = vstv %s128
    %v764 = vmul.f32 %v438, %v763
    %v765 = vmul.f32 %v439, %v763
    %v766 = vmul.f32 %v440, %v763
    %v767 = vmul.f32 %v441, %v763
    %v768 = vmul.f32 %v442, %v763
    %v769 = vmul.f32 %v443, %v763
    %v770 = vmul.f32 %v444, %v763
    %v771 = vmul.f32 %v445, %v763
    %v772 = vadd.f32 %v755, %v764
    %v773 = vadd.f32 %v756, %v765
    %v774 = vadd.f32 %v757, %v766
    %v775 = vadd.f32 %v758, %v767
    %v776 = vadd.f32 %v759, %v768
    %v777 = vadd.f32 %v760, %v769
    %v778 = vadd.f32 %v761, %v770
    %v779 = vadd.f32 %v762, %v771
    %v780 = vstv %s136
    %v781 = vmul.f32 %v481, %v780
    %v782 = vmul.f32 %v482, %v780
    %v783 = vmul.f32 %v483, %v780
    %v784 = vmul.f32 %v484, %v780
    %v785 = vmul.f32 %v485, %v780
    %v786 = vmul.f32 %v486, %v780
    %v787 = vmul.f32 %v487, %v780
    %v788 = vmul.f32 %v488, %v780
    %v789 = vadd.f32 %v772, %v781
    %v790 = vadd.f32 %v773, %v782
    %v791 = vadd.f32 %v774, %v783
    %v792 = vadd.f32 %v775, %v784
    %v793 = vadd.f32 %v776, %v785
    %v794 = vadd.f32 %v777, %v786
    %v795 = vadd.f32 %v778, %v787
    %v796 = vadd.f32 %v779, %v788
    %v797 = vstv %s144
    %v798 = vmul.f32 %v524, %v797
    %v799 = vmul.f32 %v525, %v797
    %v800 = vmul.f32 %v526, %v797
    %v801 = vmul.f32 %v527, %v797
    %v802 = vmul.f32 %v528, %v797
    %v803 = vmul.f32 %v529, %v797
    %v804 = vmul.f32 %v530, %v797
    %v805 = vmul.f32 %v531, %v797
    %v806 = vadd.f32 %v789, %v798
    %v807 = vadd.f32 %v790, %v799
    %v808 = vadd.f32 %v791, %v800
    %v809 = vadd.f32 %v792, %v801
    %v810 = vadd.f32 %v793, %v802
    %v811 = vadd.f32 %v794, %v803
    %v812 = vadd.f32 %v795, %v804
    %v813 = vadd.f32 %v796, %v805
    %v814 = vstv %s152
    %v815 = vadd.f32 %v806, %v814
    %v816 = vadd.f32 %v807, %v814
    %v817 = vadd.f32 %v808, %v814
    %v818 = vadd.f32 %v809, %v814
    %v819 = vadd.f32 %v810, %v814
    %v820 = vadd.f32 %v811, %v814
    %v821 = vadd.f32 %v812, %v814
    %v822 = vadd.f32 %v813, %v814
    %v823 = vmax.f32 %v815, 0.0
    %v824 = vmax.f32 %v816, 0.0
    %v825 = vmax.f32 %v817, 0.0
    %v826 = vmax.f32 %v818, 0.0
    %v827 = vmax.f32 %v819, 0.0
    %v828 = vmax.f32 %v820, 0.0
    %v829 = vmax.f32 %v821, 0.0
    %v830 = vmax.f32 %v822, 0.0
    %v831 = vstv %s160
    %v832 = vmul.f32 %v823, %v831
    %v833 = vmul.f32 %v824, %v831
    %v834 = vmul.f32 %v825, %v831
    %v835 = vmul.f32 %v826, %v831
    %v836 = vmul.f32 %v827, %v831
    %v837 = vmul.f32 %v828, %v831
    %v838 = vmul.f32 %v829, %v831
    %v839 = vmul.f32 %v830, %v831
    %v840 = vadd.f32 %v678, %v832
    %v841 = vadd.f32 %v679, %v833
    %v842 = vadd.f32 %v680, %v834
    %v843 = vadd.f32 %v681, %v835
    %v844 = vadd.f32 %v682, %v836
    %v845 = vadd.f32 %v683, %v837
    %v846 = vadd.f32 %v684, %v838
    %v847 = vadd.f32 %v685, %v839
    %v848 = vstv %s89
    %v849 = vmul.f32 %v223, %v848
    %v850 = vmul.f32 %v224, %v848
    %v851 = vmul.f32 %v225, %v848
    %v852 = vmul.f32 %v226, %v848
    %v853 = vmul.f32 %v227, %v848
    %v854 = vmul.f32 %v228, %v848
    %v855 = vmul.f32 %v229, %v848
    %v856 = vmul.f32 %v230, %v848
    %v857 = vstv %s97
    %v858 = vmul.f32 %v266, %v857
    %v859 = vmul.f32 %v267, %v857
    %v860 = vmul.f32 %v268, %v857
    %v861 = vmul.f32 %v269, %v857
    %v862 = vmul.f32 %v270, %v857
    %v863 = vmul.f32 %v271, %v857
    %v864 = vmul.f32 %v272, %v857
    %v865 = vmul.f32 %v273, %v857
    %v866 = vadd.f32 %v849, %v858
    %v867 = vadd.f32 %v850, %v859
    %v868 = vadd.f32 %v851, %v860
    %v869 = vadd.f32 %v852, %v861
    %v870 = vadd.f32 %v853, %v862
    %v871 = vadd.f32 %v854, %v863
    %v872 = vadd.f32 %v855, %v864
    %v873 = vadd.f32 %v856, %v865
    %v874 = vstv %s105
    %v875 = vmul.f32 %v309, %v874
    %v876 = vmul.f32 %v310, %v874
    %v877 = vmul.f32 %v311, %v874
    %v878 = vmul.f32 %v312, %v874
    %v879 = vmul.f32 %v313, %v874
    %v880 = vmul.f32 %v314, %v874
    %v881 = vmul.f32 %v315, %v874
    %v882 = vmul.f32 %v316, %v874
    %v883 = vadd.f32 %v866, %v875
    %v884 = vadd.f32 %v867, %v876
    %v885 = vadd.f32 %v868, %v877
    %v886 = vadd.f32 %v869, %v878
    %v887 = vadd.f32 %v870, %v879
    %v888 = vadd.f32 %v871, %v880
    %v889 = vadd.f32 %v872, %v881
    %v890 = vadd.f32 %v873, %v882
    %v891 = vstv %s113
    %v892 = vmul.f32 %v352, %v891
    %v893 = vmul.f32 %v353, %v891
    %v894 = vmul.f32 %v354, %v891
    %v895 = vmul.f32 %v355, %v891
    %v896 = vmul.f32 %v356, %v891
    %v897 = vmul.f32 %v357, %v891
    %v898 = vmul.f32 %v358, %v891
    %v899 = vmul.f32 %v359, %v891
    %v900 = vadd.f32 %v883, %v892
    %v901 = vadd.f32 %v884, %v893
    %v902 = vadd.f32 %v885, %v894
    %v903 = vadd.f32 %v886, %v895
    %v904 = vadd.f32 %v887, %v896
    %v905 = vadd.f32 %v888, %v897
    %v906 = vadd.f32 %v889, %v898
    %v907 = vadd.f32 %v890, %v899
    %v908 = vstv %s121
    %v909 = vmul.f32 %v395, %v908
    %v910 = vmul.f32 %v396, %v908
    %v911 = vmul.f32 %v397, %v908
    %v912 = vmul.f32 %v398, %v908
    %v913 = vmul.f32 %v399, %v908
    %v914 = vmul.f32 %v400, %v908
    %v915 = vmul.f32 %v401, %v908
    %v916 = vmul.f32 %v402, %v908
    %v917 = vadd.f32 %v900, %v909
    %v918 = vadd.f32 %v901, %v910
    %v919 = vadd.f32 %v902, %v911
    %v920 = vadd.f32 %v903, %v912
    %v921 = vadd.f32 %v904, %v913
    %v922 = vadd.f32 %v905, %v914
    %v923 = vadd.f32 %v906, %v915
    %v924 = vadd.f32 %v907, %v916
    %v925 = vstv %s129
    %v926 = vmul.f32 %v438, %v925
    %v927 = vmul.f32 %v439, %v925
    %v928 = vmul.f32 %v440, %v925
    %v929 = vmul.f32 %v441, %v925
    %v930 = vmul.f32 %v442, %v925
    %v931 = vmul.f32 %v443, %v925
    %v932 = vmul.f32 %v444, %v925
    %v933 = vmul.f32 %v445, %v925
    %v934 = vadd.f32 %v917, %v926
    %v935 = vadd.f32 %v918, %v927
    %v936 = vadd.f32 %v919, %v928
    %v937 = vadd.f32 %v920, %v929
    %v938 = vadd.f32 %v921, %v930
    %v939 = vadd.f32 %v922, %v931
    %v940 = vadd.f32 %v923, %v932
    %v941 = vadd.f32 %v924, %v933
    %v942 = vstv %s137
    %v943 = vmul.f32 %v481, %v942
    %v944 = vmul.f32 %v482, %v942
    %v945 = vmul.f32 %v483, %v942
    %v946 = vmul.f32 %v484, %v942
    %v947 = vmul.f32 %v485, %v942
    %v948 = vmul.f32 %v486, %v942
    %v949 = vmul.f32 %v487, %v942
    %v950 = vmul.f32 %v488, %v942
    %v951 = vadd.f32 %v934, %v943
    %v952 = vadd.f32 %v935, %v944
    %v953 = vadd.f32 %v936, %v945
    %v954 = vadd.f32 %v937, %v946
    %v955 = vadd.f32 %v938, %v947
    %v956 = vadd.f32 %v939, %v948
    %v957 = vadd.f32 %v940, %v949
    %v958 = vadd.f32 %v941, %v950
    %v959 = vstv %s145
    %v960 = vmul.f32 %v524, %v959
    %v961 = vmul.f32 %v525, %v959
    %v962 = vmul.f32 %v526, %v959
    %v963 = vmul.f32 %v527, %v959
    %v964 = vmul.f32 %v528, %v959
    %v965 = vmul.f32 %v529, %v959
    %v966 = vmul.f32 %v530, %v959
    %v967 = vmul.f32 %v531, %v959
    %v968 = vadd.f32 %v951, %v960
    %v969 = vadd.f32 %v952, %v961
    %v970 = vadd.f32 %v953, %v962
    %v971 = vadd.f32 %v954, %v963
    %v972 = vadd.f32 %v955, %v964
    %v973 = vadd.f32 %v956, %v965
    %v974 = vadd.f32 %v957, %v966
    %v975 = vadd.f32 %v958, %v967
    %v976 = vstv %s153
    %v977 = vadd.f32 %v968, %v976
    %v978 = vadd.f32 %v969, %v976
    %v979 = vadd.f32 %v970, %v976
    %v980 = vadd.f32 %v971, %v976
    %v981 = vadd.f32 %v972, %v976
    %v982 = vadd.f32 %v973, %v976
    %v983 = vadd.f32 %v974, %v976
    %v984 = vadd.f32 %v975, %v976
    %v985 = vmax.f32 %v977, 0.0
    %v986 = vmax.f32 %v978, 0.0
    %v987 = vmax.f32 %v979, 0.0
    %v988 = vmax.f32 %v980, 0.0
    %v989 = vmax.f32 %v981, 0.0
    %v990 = vmax.f32 %v982, 0.0
    %v991 = vmax.f32 %v983, 0.0
    %v992 = vmax.f32 %v984, 0.0
    %v993 = vstv %s161
    %v994 = vmul.f32 %v985, %v993
    %v995 = vmul.f32 %v986, %v993
    %v996 = vmul.f32 %v987, %v993
    %v997 = vmul.f32 %v988, %v993
    %v998 = vmul.f32 %v989, %v993
    %v999 = vmul.f32 %v990, %v993
    %v1000 = vmul.f32 %v991, %v993
    %v1001 = vmul.f32 %v992, %v993
    %v1002 = vadd.f32 %v840, %v994
    %v1003 = vadd.f32 %v841, %v995
    %v1004 = vadd.f32 %v842, %v996
    %v1005 = vadd.f32 %v843, %v997
    %v1006 = vadd.f32 %v844, %v998
    %v1007 = vadd.f32 %v845, %v999
    %v1008 = vadd.f32 %v846, %v1000
    %v1009 = vadd.f32 %v847, %v1001
    %v1010 = vstv %s90
    %v1011 = vmul.f32 %v223, %v1010
    %v1012 = vmul.f32 %v224, %v1010
    %v1013 = vmul.f32 %v225, %v1010
    %v1014 = vmul.f32 %v226, %v1010
    %v1015 = vmul.f32 %v227, %v1010
    %v1016 = vmul.f32 %v228, %v1010
    %v1017 = vmul.f32 %v229, %v1010
    %v1018 = vmul.f32 %v230, %v1010
    %v1019 = vstv %s98
    %v1020 = vmul.f32 %v266, %v1019
    %v1021 = vmul.f32 %v267, %v1019
    %v1022 = vmul.f32 %v268, %v1019
    %v1023 = vmul.f32 %v269, %v1019
    %v1024 = vmul.f32 %v270, %v1019
    %v1025 = vmul.f32 %v271, %v1019
    %v1026 = vmul.f32 %v272, %v1019
    %v1027 = vmul.f32 %v273, %v1019
    %v1028 = vadd.f32 %v1011, %v1020
    %v1029 = vadd.f32 %v1012, %v1021
    %v1030 = vadd.f32 %v1013, %v1022
    %v1031 = vadd.f32 %v1014, %v1023
    %v1032 = vadd.f32 %v1015, %v1024
    %v1033 = vadd.f32 %v1016, %v1025
    %v1034 = vadd.f32 %v1017, %v1026
    %v1035 = vadd.f32 %v1018, %v1027
    %v1036 = vstv %s106
    %v1037 = vmul.f32 %v309, %v1036
    %v1038 = vmul.f32 %v310, %v1036
    %v1039 = vmul.f32 %v311, %v1036
    %v1040 = vmul.f32 %v312, %v1036
    %v1041 = vmul.f32 %v313, %v1036
    %v1042 = vmul.f32 %v314, %v1036
    %v1043 = vmul.f32 %v315, %v1036
    %v1044 = vmul.f32 %v316, %v1036
    %v1045 = vadd.f32 %v1028, %v1037
    %v1046 = vadd.f32 %v1029, %v1038
    %v1047 = vadd.f32 %v1030, %v1039
    %v1048 = vadd.f32 %v1031, %v1040
    %v1049 = vadd.f32 %v1032, %v1041
    %v1050 = vadd.f32 %v1033, %v1042
    %v1051 = vadd.f32 %v1034, %v1043
    %v1052 = vadd.f32 %v1035, %v1044
    %v1053 = vstv %s114
    %v1054 = vmul.f32 %v352, %v1053
    %v1055 = vmul.f32 %v353, %v1053
    %v1056 = vmul.f32 %v354, %v1053
    %v1057 = vmul.f32 %v355, %v1053
    %v1058 = vmul.f32 %v356, %v1053
    %v1059 = vmul.f32 %v357, %v1053
    %v1060 = vmul.f32 %v358, %v1053
    %v1061 = vmul.f32 %v359, %v1053
    %v1062 = vadd.f32 %v1045, %v1054
    %v1063 = vadd.f32 %v1046, %v1055
    %v1064 = vadd.f32 %v1047, %v1056
    %v1065 = vadd.f32 %v1048, %v1057
    %v1066 = vadd.f32 %v1049, %v1058
    %v1067 = vadd.f32 %v1050, %v1059
    %v1068 = vadd.f32 %v1051, %v1060
    %v1069 = vadd.f32 %v1052, %v1061
    %v1070 = vstv %s122
    %v1071 = vmul.f32 %v395, %v1070
    %v1072 = vmul.f32 %v396, %v1070
    %v1073 = vmul.f32 %v397, %v1070
    %v1074 = vmul.f32 %v398, %v1070
    %v1075 = vmul.f32 %v399, %v1070
    %v1076 = vmul.f32 %v400, %v1070
    %v1077 = vmul.f32 %v401, %v1070
    %v1078 = vmul.f32 %v402, %v1070
    %v1079 = vadd.f32 %v1062, %v1071
    %v1080 = vadd.f32 %v1063, %v1072
    %v1081 = vadd.f32 %v1064, %v1073
    %v1082 = vadd.f32 %v1065, %v1074
    %v1083 = vadd.f32 %v1066, %v1075
    %v1084 = vadd.f32 %v1067, %v1076
    %v1085 = vadd.f32 %v1068, %v1077
    %v1086 = vadd.f32 %v1069, %v1078
    %v1087 = vstv %s130
    %v1088 = vmul.f32 %v438, %v1087
    %v1089 = vmul.f32 %v439, %v1087
    %v1090 = vmul.f32 %v440, %v1087
    %v1091 = vmul.f32 %v441, %v1087
    %v1092 = vmul.f32 %v442, %v1087
    %v1093 = vmul.f32 %v443, %v1087
    %v1094 = vmul.f32 %v444, %v1087
    %v1095 = vmul.f32 %v445, %v1087
    %v1096 = vadd.f32 %v1079, %v1088
    %v1097 = vadd.f32 %v1080, %v1089
    %v1098 = vadd.f32 %v1081, %v1090
    %v1099 = vadd.f32 %v1082, %v1091
    %v1100 = vadd.f32 %v1083, %v1092
    %v1101 = vadd.f32 %v1084, %v1093
    %v1102 = vadd.f32 %v1085, %v1094
    %v1103 = vadd.f32 %v1086, %v1095
    %v1104 = vstv %s138
    %v1105 = vmul.f32 %v481, %v1104
    %v1106 = vmul.f32 %v482, %v1104
    %v1107 = vmul.f32 %v483, %v1104
    %v1108 = vmul.f32 %v484, %v1104
    %v1109 = vmul.f32 %v485, %v1104
    %v1110 = vmul.f32 %v486, %v1104
    %v1111 = vmul.f32 %v487, %v1104
    %v1112 = vmul.f32 %v488, %v1104
    %v1113 = vadd.f32 %v1096, %v1105
    %v1114 = vadd.f32 %v1097, %v1106
    %v1115 = vadd.f32 %v1098, %v1107
    %v1116 = vadd.f32 %v1099, %v1108
    %v1117 = vadd.f32 %v1100, %v1109
    %v1118 = vadd.f32 %v1101, %v1110
    %v1119 = vadd.f32 %v1102, %v1111
    %v1120 = vadd.f32 %v1103, %v1112
    %v1121 = vstv %s146
    %v1122 = vmul.f32 %v524, %v1121
    %v1123 = vmul.f32 %v525, %v1121
    %v1124 = vmul.f32 %v526, %v1121
    %v1125 = vmul.f32 %v527, %v1121
    %v1126 = vmul.f32 %v528, %v1121
    %v1127 = vmul.f32 %v529, %v1121
    %v1128 = vmul.f32 %v530, %v1121
    %v1129 = vmul.f32 %v531, %v1121
    %v1130 = vadd.f32 %v1113, %v1122
    %v1131 = vadd.f32 %v1114, %v1123
    %v1132 = vadd.f32 %v1115, %v1124
    %v1133 = vadd.f32 %v1116, %v1125
    %v1134 = vadd.f32 %v1117, %v1126
    %v1135 = vadd.f32 %v1118, %v1127
    %v1136 = vadd.f32 %v1119, %v1128
    %v1137 = vadd.f32 %v1120, %v1129
    %v1138 = vstv %s154
    %v1139 = vadd.f32 %v1130, %v1138
    %v1140 = vadd.f32 %v1131, %v1138
    %v1141 = vadd.f32 %v1132, %v1138
    %v1142 = vadd.f32 %v1133, %v1138
    %v1143 = vadd.f32 %v1134, %v1138
    %v1144 = vadd.f32 %v1135, %v1138
    %v1145 = vadd.f32 %v1136, %v1138
    %v1146 = vadd.f32 %v1137, %v1138
    %v1147 = vmax.f32 %v1139, 0.0
    %v1148 = vmax.f32 %v1140, 0.0
    %v1149 = vmax.f32 %v1141, 0.0
    %v1150 = vmax.f32 %v1142, 0.0
    %v1151 = vmax.f32 %v1143, 0.0
    %v1152 = vmax.f32 %v1144, 0.0
    %v1153 = vmax.f32 %v1145, 0.0
    %v1154 = vmax.f32 %v1146, 0.0
    %v1155 = vstv %s162
    %v1156 = vmul.f32 %v1147, %v1155
    %v1157 = vmul.f32 %v1148, %v1155
    %v1158 = vmul.f32 %v1149, %v1155
    %v1159 = vmul.f32 %v1150, %v1155
    %v1160 = vmul.f32 %v1151, %v1155
    %v1161 = vmul.f32 %v1152, %v1155
    %v1162 = vmul.f32 %v1153, %v1155
    %v1163 = vmul.f32 %v1154, %v1155
    %v1164 = vadd.f32 %v1002, %v1156
    %v1165 = vadd.f32 %v1003, %v1157
    %v1166 = vadd.f32 %v1004, %v1158
    %v1167 = vadd.f32 %v1005, %v1159
    %v1168 = vadd.f32 %v1006, %v1160
    %v1169 = vadd.f32 %v1007, %v1161
    %v1170 = vadd.f32 %v1008, %v1162
    %v1171 = vadd.f32 %v1009, %v1163
    %v1172 = vstv %s91
    %v1173 = vmul.f32 %v223, %v1172
    %v1174 = vmul.f32 %v224, %v1172
    %v1175 = vmul.f32 %v225, %v1172
    %v1176 = vmul.f32 %v226, %v1172
    %v1177 = vmul.f32 %v227, %v1172
    %v1178 = vmul.f32 %v228, %v1172
    %v1179 = vmul.f32 %v229, %v1172
    %v1180 = vmul.f32 %v230, %v1172
    %v1181 = vstv %s99
    %v1182 = vmul.f32 %v266, %v1181
    %v1183 = vmul.f32 %v267, %v1181
    %v1184 = vmul.f32 %v268, %v1181
    %v1185 = vmul.f32 %v269, %v1181
    %v1186 = vmul.f32 %v270, %v1181
    %v1187 = vmul.f32 %v271, %v1181
    %v1188 = vmul.f32 %v272, %v1181
    %v1189 = vmul.f32 %v273, %v1181
    %v1190 = vadd.f32 %v1173, %v1182
    %v1191 = vadd.f32 %v1174, %v1183
    %v1192 = vadd.f32 %v1175, %v1184
    %v1193 = vadd.f32 %v1176, %v1185
    %v1194 = vadd.f32 %v1177, %v1186
    %v1195 = vadd.f32 %v1178, %v1187
    %v1196 = vadd.f32 %v1179, %v1188
    %v1197 = vadd.f32 %v1180, %v1189
    %v1198 = vstv %s107
    %v1199 = vmul.f32 %v309, %v1198
    %v1200 = vmul.f32 %v310, %v1198
    %v1201 = vmul.f32 %v311, %v1198
    %v1202 = vmul.f32 %v312, %v1198
    %v1203 = vmul.f32 %v313, %v1198
    %v1204 = vmul.f32 %v314, %v1198
    %v1205 = vmul.f32 %v315, %v1198
    %v1206 = vmul.f32 %v316, %v1198
    %v1207 = vadd.f32 %v1190, %v1199
    %v1208 = vadd.f32 %v1191, %v1200
    %v1209 = vadd.f32 %v1192, %v1201
    %v1210 = vadd.f32 %v1193, %v1202
    %v1211 = vadd.f32 %v1194, %v1203
    %v1212 = vadd.f32 %v1195, %v1204
    %v1213 = vadd.f32 %v1196, %v1205
    %v1214 = vadd.f32 %v1197, %v1206
    %v1215 = vstv %s115
    %v1216 = vmul.f32 %v352, %v1215
    %v1217 = vmul.f32 %v353, %v1215
    %v1218 = vmul.f32 %v354, %v1215
    %v1219 = vmul.f32 %v355, %v1215
    %v1220 = vmul.f32 %v356, %v1215
    %v1221 = vmul.f32 %v357, %v1215
    %v1222 = vmul.f32 %v358, %v1215
    %v1223 = vmul.f32 %v359, %v1215
    %v1224 = vadd.f32 %v1207, %v1216
    %v1225 = vadd.f32 %v1208, %v1217
    %v1226 = vadd.f32 %v1209, %v1218
    %v1227 = vadd.f32 %v1210, %v1219
    %v1228 = vadd.f32 %v1211, %v1220
    %v1229 = vadd.f32 %v1212, %v1221
    %v1230 = vadd.f32 %v1213, %v1222
    %v1231 = vadd.f32 %v1214, %v1223
    %v1232 = vstv %s123
    %v1233 = vmul.f32 %v395, %v1232
    %v1234 = vmul.f32 %v396, %v1232
    %v1235 = vmul.f32 %v397, %v1232
    %v1236 = vmul.f32 %v398, %v1232
    %v1237 = vmul.f32 %v399, %v1232
    %v1238 = vmul.f32 %v400, %v1232
    %v1239 = vmul.f32 %v401, %v1232
    %v1240 = vmul.f32 %v402, %v1232
    %v1241 = vadd.f32 %v1224, %v1233
    %v1242 = vadd.f32 %v1225, %v1234
    %v1243 = vadd.f32 %v1226, %v1235
    %v1244 = vadd.f32 %v1227, %v1236
    %v1245 = vadd.f32 %v1228, %v1237
    %v1246 = vadd.f32 %v1229, %v1238
    %v1247 = vadd.f32 %v1230, %v1239
    %v1248 = vadd.f32 %v1231, %v1240
    %v1249 = vstv %s131
    %v1250 = vmul.f32 %v438, %v1249
    %v1251 = vmul.f32 %v439, %v1249
    %v1252 = vmul.f32 %v440, %v1249
    %v1253 = vmul.f32 %v441, %v1249
    %v1254 = vmul.f32 %v442, %v1249
    %v1255 = vmul.f32 %v443, %v1249
    %v1256 = vmul.f32 %v444, %v1249
    %v1257 = vmul.f32 %v445, %v1249
    %v1258 = vadd.f32 %v1241, %v1250
    %v1259 = vadd.f32 %v1242, %v1251
    %v1260 = vadd.f32 %v1243, %v1252
    %v1261 = vadd.f32 %v1244, %v1253
    %v1262 = vadd.f32 %v1245, %v1254
    %v1263 = vadd.f32 %v1246, %v1255
    %v1264 = vadd.f32 %v1247, %v1256
    %v1265 = vadd.f32 %v1248, %v1257
    %v1266 = vstv %s139
    %v1267 = vmul.f32 %v481, %v1266
    %v1268 = vmul.f32 %v482, %v1266
    %v1269 = vmul.f32 %v483, %v1266
    %v1270 = vmul.f32 %v484, %v1266
    %v1271 = vmul.f32 %v485, %v1266
    %v1272 = vmul.f32 %v486, %v1266
    %v1273 = vmul.f32 %v487, %v1266
    %v1274 = vmul.f32 %v488, %v1266
    %v1275 = vadd.f32 %v1258, %v1267
    %v1276 = vadd.f32 %v1259, %v1268
    %v1277 = vadd.f32 %v1260, %v1269
    %v1278 = vadd.f32 %v1261, %v1270
    %v1279 = vadd.f32 %v1262, %v1271
    %v1280 = vadd.f32 %v1263, %v1272
    %v1281 = vadd.f32 %v1264, %v1273
    %v1282 = vadd.f32 %v1265, %v1274
    %v1283 = vstv %s147
    %v1284 = vmul.f32 %v524, %v1283
    %v1285 = vmul.f32 %v525, %v1283
    %v1286 = vmul.f32 %v526, %v1283
    %v1287 = vmul.f32 %v527, %v1283
    %v1288 = vmul.f32 %v528, %v1283
    %v1289 = vmul.f32 %v529, %v1283
    %v1290 = vmul.f32 %v530, %v1283
    %v1291 = vmul.f32 %v531, %v1283
    %v1292 = vadd.f32 %v1275, %v1284
    %v1293 = vadd.f32 %v1276, %v1285
    %v1294 = vadd.f32 %v1277, %v1286
    %v1295 = vadd.f32 %v1278, %v1287
    %v1296 = vadd.f32 %v1279, %v1288
    %v1297 = vadd.f32 %v1280, %v1289
    %v1298 = vadd.f32 %v1281, %v1290
    %v1299 = vadd.f32 %v1282, %v1291
    %v1300 = vstv %s155
    %v1301 = vadd.f32 %v1292, %v1300
    %v1302 = vadd.f32 %v1293, %v1300
    %v1303 = vadd.f32 %v1294, %v1300
    %v1304 = vadd.f32 %v1295, %v1300
    %v1305 = vadd.f32 %v1296, %v1300
    %v1306 = vadd.f32 %v1297, %v1300
    %v1307 = vadd.f32 %v1298, %v1300
    %v1308 = vadd.f32 %v1299, %v1300
    %v1309 = vmax.f32 %v1301, 0.0
    %v1310 = vmax.f32 %v1302, 0.0
    %v1311 = vmax.f32 %v1303, 0.0
    %v1312 = vmax.f32 %v1304, 0.0
    %v1313 = vmax.f32 %v1305, 0.0
    %v1314 = vmax.f32 %v1306, 0.0
    %v1315 = vmax.f32 %v1307, 0.0
    %v1316 = vmax.f32 %v1308, 0.0
    %v1317 = vstv %s163
    %v1318 = vmul.f32 %v1309, %v1317
    %v1319 = vmul.f32 %v1310, %v1317
    %v1320 = vmul.f32 %v1311, %v1317
    %v1321 = vmul.f32 %v1312, %v1317
    %v1322 = vmul.f32 %v1313, %v1317
    %v1323 = vmul.f32 %v1314, %v1317
    %v1324 = vmul.f32 %v1315, %v1317
    %v1325 = vmul.f32 %v1316, %v1317
    %v1326 = vadd.f32 %v1164, %v1318
    %v1327 = vadd.f32 %v1165, %v1319
    %v1328 = vadd.f32 %v1166, %v1320
    %v1329 = vadd.f32 %v1167, %v1321
    %v1330 = vadd.f32 %v1168, %v1322
    %v1331 = vadd.f32 %v1169, %v1323
    %v1332 = vadd.f32 %v1170, %v1324
    %v1333 = vadd.f32 %v1171, %v1325
    %v1334 = vstv %s92
    %v1335 = vmul.f32 %v223, %v1334
    %v1336 = vmul.f32 %v224, %v1334
    %v1337 = vmul.f32 %v225, %v1334
    %v1338 = vmul.f32 %v226, %v1334
    %v1339 = vmul.f32 %v227, %v1334
    %v1340 = vmul.f32 %v228, %v1334
    %v1341 = vmul.f32 %v229, %v1334
    %v1342 = vmul.f32 %v230, %v1334
    %v1343 = vstv %s100
    %v1344 = vmul.f32 %v266, %v1343
    %v1345 = vmul.f32 %v267, %v1343
    %v1346 = vmul.f32 %v268, %v1343
    %v1347 = vmul.f32 %v269, %v1343
    %v1348 = vmul.f32 %v270, %v1343
    %v1349 = vmul.f32 %v271, %v1343
    %v1350 = vmul.f32 %v272, %v1343
    %v1351 = vmul.f32 %v273, %v1343
    %v1352 = vadd.f32 %v1335, %v1344
    %v1353 = vadd.f32 %v1336, %v1345
    %v1354 = vadd.f32 %v1337, %v1346
    %v1355 = vadd.f32 %v1338, %v1347
    %v1356 = vadd.f32 %v1339, %v1348
    %v1357 = vadd.f32 %v1340, %v1349
    %v1358 = vadd.f32 %v1341, %v1350
    %v1359 = vadd.f32 %v1342, %v1351
    %v1360 = vstv %s108
    %v1361 = vmul.f32 %v309, %v1360
    %v1362 = vmul.f32 %v310, %v1360
    %v1363 = vmul.f32 %v311, %v1360
    %v1364 = vmul.f32 %v312, %v1360
    %v1365 = vmul.f32 %v313, %v1360
    %v1366 = vmul.f32 %v314, %v1360
    %v1367 = vmul.f32 %v315, %v1360
    %v1368 = vmul.f32 %v316, %v1360
    %v1369 = vadd.f32 %v1352, %v1361
    %v1370 = vadd.f32 %v1353, %v1362
    %v1371 = vadd.f32 %v1354, %v1363
    %v1372 = vadd.f32 %v1355, %v1364
    %v1373 = vadd.f32 %v1356, %v1365
    %v1374 = vadd.f32 %v1357, %v1366
    %v1375 = vadd.f32 %v1358, %v1367
    %v1376 = vadd.f32 %v1359, %v1368
    %v1377 = vstv %s116
    %v1378 = vmul.f32 %v352, %v1377
    %v1379 = vmul.f32 %v353, %v1377
    %v1380 = vmul.f32 %v354, %v1377
    %v1381 = vmul.f32 %v355, %v1377
    %v1382 = vmul.f32 %v356, %v1377
    %v1383 = vmul.f32 %v357, %v1377
    %v1384 = vmul.f32 %v358, %v1377
    %v1385 = vmul.f32 %v359, %v1377
    %v1386 = vadd.f32 %v1369, %v1378
    %v1387 = vadd.f32 %v1370, %v1379
    %v1388 = vadd.f32 %v1371, %v1380
    %v1389 = vadd.f32 %v1372, %v1381
    %v1390 = vadd.f32 %v1373, %v1382
    %v1391 = vadd.f32 %v1374, %v1383
    %v1392 = vadd.f32 %v1375, %v1384
    %v1393 = vadd.f32 %v1376, %v1385
    %v1394 = vstv %s124
    %v1395 = vmul.f32 %v395, %v1394
    %v1396 = vmul.f32 %v396, %v1394
    %v1397 = vmul.f32 %v397, %v1394
    %v1398 = vmul.f32 %v398, %v1394
    %v1399 = vmul.f32 %v399, %v1394
    %v1400 = vmul.f32 %v400, %v1394
    %v1401 = vmul.f32 %v401, %v1394
    %v1402 = vmul.f32 %v402, %v1394
    %v1403 = vadd.f32 %v1386, %v1395
    %v1404 = vadd.f32 %v1387, %v1396
    %v1405 = vadd.f32 %v1388, %v1397
    %v1406 = vadd.f32 %v1389, %v1398
    %v1407 = vadd.f32 %v1390, %v1399
    %v1408 = vadd.f32 %v1391, %v1400
    %v1409 = vadd.f32 %v1392, %v1401
    %v1410 = vadd.f32 %v1393, %v1402
    %v1411 = vstv %s132
    %v1412 = vmul.f32 %v438, %v1411
    %v1413 = vmul.f32 %v439, %v1411
    %v1414 = vmul.f32 %v440, %v1411
    %v1415 = vmul.f32 %v441, %v1411
    %v1416 = vmul.f32 %v442, %v1411
    %v1417 = vmul.f32 %v443, %v1411
    %v1418 = vmul.f32 %v444, %v1411
    %v1419 = vmul.f32 %v445, %v1411
    %v1420 = vadd.f32 %v1403, %v1412
    %v1421 = vadd.f32 %v1404, %v1413
    %v1422 = vadd.f32 %v1405, %v1414
    %v1423 = vadd.f32 %v1406, %v1415
    %v1424 = vadd.f32 %v1407, %v1416
    %v1425 = vadd.f32 %v1408, %v1417
    %v1426 = vadd.f32 %v1409, %v1418
    %v1427 = vadd.f32 %v1410, %v1419
    %v1428 = vstv %s140
    %v1429 = vmul.f32 %v481, %v1428
    %v1430 = vmul.f32 %v482, %v1428
    %v1431 = vmul.f32 %v483, %v1428
    %v1432 = vmul.f32 %v484, %v1428
    %v1433 = vmul.f32 %v485, %v1428
    %v1434 = vmul.f32 %v486, %v1428
    %v1435 = vmul.f32 %v487, %v1428
    %v1436 = vmul.f32 %v488, %v1428
    %v1437 = vadd.f32 %v1420, %v1429
    %v1438 = vadd.f32 %v1421, %v1430
    %v1439 = vadd.f32 %v1422, %v1431
    %v1440 = vadd.f32 %v1423, %v1432
    %v1441 = vadd.f32 %v1424, %v1433
    %v1442 = vadd.f32 %v1425, %v1434
    %v1443 = vadd.f32 %v1426, %v1435
    %v1444 = vadd.f32 %v1427, %v1436
    %v1445 = vstv %s148
    %v1446 = vmul.f32 %v524, %v1445
    %v1447 = vmul.f32 %v525, %v1445
    %v1448 = vmul.f32 %v526, %v1445
    %v1449 = vmul.f32 %v527, %v1445
    %v1450 = vmul.f32 %v528, %v1445
    %v1451 = vmul.f32 %v529, %v1445
    %v1452 = vmul.f32 %v530, %v1445
    %v1453 = vmul.f32 %v531, %v1445
    %v1454 = vadd.f32 %v1437, %v1446
    %v1455 = vadd.f32 %v1438, %v1447
    %v1456 = vadd.f32 %v1439, %v1448
    %v1457 = vadd.f32 %v1440, %v1449
    %v1458 = vadd.f32 %v1441, %v1450
    %v1459 = vadd.f32 %v1442, %v1451
    %v1460 = vadd.f32 %v1443, %v1452
    %v1461 = vadd.f32 %v1444, %v1453
    %v1462 = vstv %s156
    %v1463 = vadd.f32 %v1454, %v1462
    %v1464 = vadd.f32 %v1455, %v1462
    %v1465 = vadd.f32 %v1456, %v1462
    %v1466 = vadd.f32 %v1457, %v1462
    %v1467 = vadd.f32 %v1458, %v1462
    %v1468 = vadd.f32 %v1459, %v1462
    %v1469 = vadd.f32 %v1460, %v1462
    %v1470 = vadd.f32 %v1461, %v1462
    %v1471 = vmax.f32 %v1463, 0.0
    %v1472 = vmax.f32 %v1464, 0.0
    %v1473 = vmax.f32 %v1465, 0.0
    %v1474 = vmax.f32 %v1466, 0.0
    %v1475 = vmax.f32 %v1467, 0.0
    %v1476 = vmax.f32 %v1468, 0.0
    %v1477 = vmax.f32 %v1469, 0.0
    %v1478 = vmax.f32 %v1470, 0.0
    %v1479 = vstv %s164
    %v1480 = vmul.f32 %v1471, %v1479
    %v1481 = vmul.f32 %v1472, %v1479
    %v1482 = vmul.f32 %v1473, %v1479
    %v1483 = vmul.f32 %v1474, %v1479
    %v1484 = vmul.f32 %v1475, %v1479
    %v1485 = vmul.f32 %v1476, %v1479
    %v1486 = vmul.f32 %v1477, %v1479
    %v1487 = vmul.f32 %v1478, %v1479
    %v1488 = vadd.f32 %v1326, %v1480
    %v1489 = vadd.f32 %v1327, %v1481
    %v1490 = vadd.f32 %v1328, %v1482
    %v1491 = vadd.f32 %v1329, %v1483
    %v1492 = vadd.f32 %v1330, %v1484
    %v1493 = vadd.f32 %v1331, %v1485
    %v1494 = vadd.f32 %v1332, %v1486
    %v1495 = vadd.f32 %v1333, %v1487
    %v1496 = vstv %s93
    %v1497 = vmul.f32 %v223, %v1496
    %v1498 = vmul.f32 %v224, %v1496
    %v1499 = vmul.f32 %v225, %v1496
    %v1500 = vmul.f32 %v226, %v1496
    %v1501 = vmul.f32 %v227, %v1496
    %v1502 = vmul.f32 %v228, %v1496
    %v1503 = vmul.f32 %v229, %v1496
    %v1504 = vmul.f32 %v230, %v1496
    %v1505 = vstv %s101
    %v1506 = vmul.f32 %v266, %v1505
    %v1507 = vmul.f32 %v267, %v1505
    %v1508 = vmul.f32 %v268, %v1505
    %v1509 = vmul.f32 %v269, %v1505
    %v1510 = vmul.f32 %v270, %v1505
    %v1511 = vmul.f32 %v271, %v1505
    %v1512 = vmul.f32 %v272, %v1505
    %v1513 = vmul.f32 %v273, %v1505
    %v1514 = vadd.f32 %v1497, %v1506
    %v1515 = vadd.f32 %v1498, %v1507
    %v1516 = vadd.f32 %v1499, %v1508
    %v1517 = vadd.f32 %v1500, %v1509
    %v1518 = vadd.f32 %v1501, %v1510
    %v1519 = vadd.f32 %v1502, %v1511
    %v1520 = vadd.f32 %v1503, %v1512
    %v1521 = vadd.f32 %v1504, %v1513
    %v1522 = vstv %s109
    %v1523 = vmul.f32 %v309, %v1522
    %v1524 = vmul.f32 %v310, %v1522
    %v1525 = vmul.f32 %v311, %v1522
    %v1526 = vmul.f32 %v312, %v1522
    %v1527 = vmul.f32 %v313, %v1522
    %v1528 = vmul.f32 %v314, %v1522
    %v1529 = vmul.f32 %v315, %v1522
    %v1530 = vmul.f32 %v316, %v1522
    %v1531 = vadd.f32 %v1514, %v1523
    %v1532 = vadd.f32 %v1515, %v1524
    %v1533 = vadd.f32 %v1516, %v1525
    %v1534 = vadd.f32 %v1517, %v1526
    %v1535 = vadd.f32 %v1518, %v1527
    %v1536 = vadd.f32 %v1519, %v1528
    %v1537 = vadd.f32 %v1520, %v1529
    %v1538 = vadd.f32 %v1521, %v1530
    %v1539 = vstv %s117
    %v1540 = vmul.f32 %v352, %v1539
    %v1541 = vmul.f32 %v353, %v1539
    %v1542 = vmul.f32 %v354, %v1539
    %v1543 = vmul.f32 %v355, %v1539
    %v1544 = vmul.f32 %v356, %v1539
    %v1545 = vmul.f32 %v357, %v1539
    %v1546 = vmul.f32 %v358, %v1539
    %v1547 = vmul.f32 %v359, %v1539
    %v1548 = vadd.f32 %v1531, %v1540
    %v1549 = vadd.f32 %v1532, %v1541
    %v1550 = vadd.f32 %v1533, %v1542
    %v1551 = vadd.f32 %v1534, %v1543
    %v1552 = vadd.f32 %v1535, %v1544
    %v1553 = vadd.f32 %v1536, %v1545
    %v1554 = vadd.f32 %v1537, %v1546
    %v1555 = vadd.f32 %v1538, %v1547
    %v1556 = vstv %s125
    %v1557 = vmul.f32 %v395, %v1556
    %v1558 = vmul.f32 %v396, %v1556
    %v1559 = vmul.f32 %v397, %v1556
    %v1560 = vmul.f32 %v398, %v1556
    %v1561 = vmul.f32 %v399, %v1556
    %v1562 = vmul.f32 %v400, %v1556
    %v1563 = vmul.f32 %v401, %v1556
    %v1564 = vmul.f32 %v402, %v1556
    %v1565 = vadd.f32 %v1548, %v1557
    %v1566 = vadd.f32 %v1549, %v1558
    %v1567 = vadd.f32 %v1550, %v1559
    %v1568 = vadd.f32 %v1551, %v1560
    %v1569 = vadd.f32 %v1552, %v1561
    %v1570 = vadd.f32 %v1553, %v1562
    %v1571 = vadd.f32 %v1554, %v1563
    %v1572 = vadd.f32 %v1555, %v1564
    %v1573 = vstv %s133
    %v1574 = vmul.f32 %v438, %v1573
    %v1575 = vmul.f32 %v439, %v1573
    %v1576 = vmul.f32 %v440, %v1573
    %v1577 = vmul.f32 %v441, %v1573
    %v1578 = vmul.f32 %v442, %v1573
    %v1579 = vmul.f32 %v443, %v1573
    %v1580 = vmul.f32 %v444, %v1573
    %v1581 = vmul.f32 %v445, %v1573
    %v1582 = vadd.f32 %v1565, %v1574
    %v1583 = vadd.f32 %v1566, %v1575
    %v1584 = vadd.f32 %v1567, %v1576
    %v1585 = vadd.f32 %v1568, %v1577
    %v1586 = vadd.f32 %v1569, %v1578
    %v1587 = vadd.f32 %v1570, %v1579
    %v1588 = vadd.f32 %v1571, %v1580
    %v1589 = vadd.f32 %v1572, %v1581
    %v1590 = vstv %s141
    %v1591 = vmul.f32 %v481, %v1590
    %v1592 = vmul.f32 %v482, %v1590
    %v1593 = vmul.f32 %v483, %v1590
    %v1594 = vmul.f32 %v484, %v1590
    %v1595 = vmul.f32 %v485, %v1590
    %v1596 = vmul.f32 %v486, %v1590
    %v1597 = vmul.f32 %v487, %v1590
    %v1598 = vmul.f32 %v488, %v1590
    %v1599 = vadd.f32 %v1582, %v1591
    %v1600 = vadd.f32 %v1583, %v1592
    %v1601 = vadd.f32 %v1584, %v1593
    %v1602 = vadd.f32 %v1585, %v1594
    %v1603 = vadd.f32 %v1586, %v1595
    %v1604 = vadd.f32 %v1587, %v1596
    %v1605 = vadd.f32 %v1588, %v1597
    %v1606 = vadd.f32 %v1589, %v1598
    %v1607 = vstv %s149
    %v1608 = vmul.f32 %v524, %v1607
    %v1609 = vmul.f32 %v525, %v1607
    %v1610 = vmul.f32 %v526, %v1607
    %v1611 = vmul.f32 %v527, %v1607
    %v1612 = vmul.f32 %v528, %v1607
    %v1613 = vmul.f32 %v529, %v1607
    %v1614 = vmul.f32 %v530, %v1607
    %v1615 = vmul.f32 %v531, %v1607
    %v1616 = vadd.f32 %v1599, %v1608
    %v1617 = vadd.f32 %v1600, %v1609
    %v1618 = vadd.f32 %v1601, %v1610
    %v1619 = vadd.f32 %v1602, %v1611
    %v1620 = vadd.f32 %v1603, %v1612
    %v1621 = vadd.f32 %v1604, %v1613
    %v1622 = vadd.f32 %v1605, %v1614
    %v1623 = vadd.f32 %v1606, %v1615
    %v1624 = vstv %s157
    %v1625 = vadd.f32 %v1616, %v1624
    %v1626 = vadd.f32 %v1617, %v1624
    %v1627 = vadd.f32 %v1618, %v1624
    %v1628 = vadd.f32 %v1619, %v1624
    %v1629 = vadd.f32 %v1620, %v1624
    %v1630 = vadd.f32 %v1621, %v1624
    %v1631 = vadd.f32 %v1622, %v1624
    %v1632 = vadd.f32 %v1623, %v1624
    %v1633 = vmax.f32 %v1625, 0.0
    %v1634 = vmax.f32 %v1626, 0.0
    %v1635 = vmax.f32 %v1627, 0.0
    %v1636 = vmax.f32 %v1628, 0.0
    %v1637 = vmax.f32 %v1629, 0.0
    %v1638 = vmax.f32 %v1630, 0.0
    %v1639 = vmax.f32 %v1631, 0.0
    %v1640 = vmax.f32 %v1632, 0.0
    %v1641 = vstv %s165
    %v1642 = vmul.f32 %v1633, %v1641
    %v1643 = vmul.f32 %v1634, %v1641
    %v1644 = vmul.f32 %v1635, %v1641
    %v1645 = vmul.f32 %v1636, %v1641
    %v1646 = vmul.f32 %v1637, %v1641
    %v1647 = vmul.f32 %v1638, %v1641
    %v1648 = vmul.f32 %v1639, %v1641
    %v1649 = vmul.f32 %v1640, %v1641
    %v1650 = vadd.f32 %v1488, %v1642
    %v1651 = vadd.f32 %v1489, %v1643
    %v1652 = vadd.f32 %v1490, %v1644
    %v1653 = vadd.f32 %v1491, %v1645
    %v1654 = vadd.f32 %v1492, %v1646
    %v1655 = vadd.f32 %v1493, %v1647
    %v1656 = vadd.f32 %v1494, %v1648
    %v1657 = vadd.f32 %v1495, %v1649
    %v1658 = vstv %s94
    %v1659 = vmul.f32 %v223, %v1658
    %v1660 = vmul.f32 %v224, %v1658
    %v1661 = vmul.f32 %v225, %v1658
    %v1662 = vmul.f32 %v226, %v1658
    %v1663 = vmul.f32 %v227, %v1658
    %v1664 = vmul.f32 %v228, %v1658
    %v1665 = vmul.f32 %v229, %v1658
    %v1666 = vmul.f32 %v230, %v1658
    %v1667 = vstv %s102
    %v1668 = vmul.f32 %v266, %v1667
    %v1669 = vmul.f32 %v267, %v1667
    %v1670 = vmul.f32 %v268, %v1667
    %v1671 = vmul.f32 %v269, %v1667
    %v1672 = vmul.f32 %v270, %v1667
    %v1673 = vmul.f32 %v271, %v1667
    %v1674 = vmul.f32 %v272, %v1667
    %v1675 = vmul.f32 %v273, %v1667
    %v1676 = vadd.f32 %v1659, %v1668
    %v1677 = vadd.f32 %v1660, %v1669
    %v1678 = vadd.f32 %v1661, %v1670
    %v1679 = vadd.f32 %v1662, %v1671
    %v1680 = vadd.f32 %v1663, %v1672
    %v1681 = vadd.f32 %v1664, %v1673
    %v1682 = vadd.f32 %v1665, %v1674
    %v1683 = vadd.f32 %v1666, %v1675
    %v1684 = vstv %s110
    %v1685 = vmul.f32 %v309, %v1684
    %v1686 = vmul.f32 %v310, %v1684
    %v1687 = vmul.f32 %v311, %v1684
    %v1688 = vmul.f32 %v312, %v1684
    %v1689 = vmul.f32 %v313, %v1684
    %v1690 = vmul.f32 %v314, %v1684
    %v1691 = vmul.f32 %v315, %v1684
    %v1692 = vmul.f32 %v316, %v1684
    %v1693 = vadd.f32 %v1676, %v1685
    %v1694 = vadd.f32 %v1677, %v1686
    %v1695 = vadd.f32 %v1678, %v1687
    %v1696 = vadd.f32 %v1679, %v1688
    %v1697 = vadd.f32 %v1680, %v1689
    %v1698 = vadd.f32 %v1681, %v1690
    %v1699 = vadd.f32 %v1682, %v1691
    %v1700 = vadd.f32 %v1683, %v1692
    %v1701 = vstv %s118
    %v1702 = vmul.f32 %v352, %v1701
    %v1703 = vmul.f32 %v353, %v1701
    %v1704 = vmul.f32 %v354, %v1701
    %v1705 = vmul.f32 %v355, %v1701
    %v1706 = vmul.f32 %v356, %v1701
    %v1707 = vmul.f32 %v357, %v1701
    %v1708 = vmul.f32 %v358, %v1701
    %v1709 = vmul.f32 %v359, %v1701
    %v1710 = vadd.f32 %v1693, %v1702
    %v1711 = vadd.f32 %v1694, %v1703
    %v1712 = vadd.f32 %v1695, %v1704
    %v1713 = vadd.f32 %v1696, %v1705
    %v1714 = vadd.f32 %v1697, %v1706
    %v1715 = vadd.f32 %v1698, %v1707
    %v1716 = vadd.f32 %v1699, %v1708
    %v1717 = vadd.f32 %v1700, %v1709
    %v1718 = vstv %s126
    %v1719 = vmul.f32 %v395, %v1718
    %v1720 = vmul.f32 %v396, %v1718
    %v1721 = vmul.f32 %v397, %v1718
    %v1722 = vmul.f32 %v398, %v1718
    %v1723 = vmul.f32 %v399, %v1718
    %v1724 = vmul.f32 %v400, %v1718
    %v1725 = vmul.f32 %v401, %v1718
    %v1726 = vmul.f32 %v402, %v1718
    %v1727 = vadd.f32 %v1710, %v1719
    %v1728 = vadd.f32 %v1711, %v1720
    %v1729 = vadd.f32 %v1712, %v1721
    %v1730 = vadd.f32 %v1713, %v1722
    %v1731 = vadd.f32 %v1714, %v1723
    %v1732 = vadd.f32 %v1715, %v1724
    %v1733 = vadd.f32 %v1716, %v1725
    %v1734 = vadd.f32 %v1717, %v1726
    %v1735 = vstv %s134
    %v1736 = vmul.f32 %v438, %v1735
    %v1737 = vmul.f32 %v439, %v1735
    %v1738 = vmul.f32 %v440, %v1735
    %v1739 = vmul.f32 %v441, %v1735
    %v1740 = vmul.f32 %v442, %v1735
    %v1741 = vmul.f32 %v443, %v1735
    %v1742 = vmul.f32 %v444, %v1735
    %v1743 = vmul.f32 %v445, %v1735
    %v1744 = vadd.f32 %v1727, %v1736
    %v1745 = vadd.f32 %v1728, %v1737
    %v1746 = vadd.f32 %v1729, %v1738
    %v1747 = vadd.f32 %v1730, %v1739
    %v1748 = vadd.f32 %v1731, %v1740
    %v1749 = vadd.f32 %v1732, %v1741
    %v1750 = vadd.f32 %v1733, %v1742
    %v1751 = vadd.f32 %v1734, %v1743
    %v1752 = vstv %s142
    %v1753 = vmul.f32 %v481, %v1752
    %v1754 = vmul.f32 %v482, %v1752
    %v1755 = vmul.f32 %v483, %v1752
    %v1756 = vmul.f32 %v484, %v1752
    %v1757 = vmul.f32 %v485, %v1752
    %v1758 = vmul.f32 %v486, %v1752
    %v1759 = vmul.f32 %v487, %v1752
    %v1760 = vmul.f32 %v488, %v1752
    %v1761 = vadd.f32 %v1744, %v1753
    %v1762 = vadd.f32 %v1745, %v1754
    %v1763 = vadd.f32 %v1746, %v1755
    %v1764 = vadd.f32 %v1747, %v1756
    %v1765 = vadd.f32 %v1748, %v1757
    %v1766 = vadd.f32 %v1749, %v1758
    %v1767 = vadd.f32 %v1750, %v1759
    %v1768 = vadd.f32 %v1751, %v1760
    %v1769 = vstv %s150
    %v1770 = vmul.f32 %v524, %v1769
    %v1771 = vmul.f32 %v525, %v1769
    %v1772 = vmul.f32 %v526, %v1769
    %v1773 = vmul.f32 %v527, %v1769
    %v1774 = vmul.f32 %v528, %v1769
    %v1775 = vmul.f32 %v529, %v1769
    %v1776 = vmul.f32 %v530, %v1769
    %v1777 = vmul.f32 %v531, %v1769
    %v1778 = vadd.f32 %v1761, %v1770
    %v1779 = vadd.f32 %v1762, %v1771
    %v1780 = vadd.f32 %v1763, %v1772
    %v1781 = vadd.f32 %v1764, %v1773
    %v1782 = vadd.f32 %v1765, %v1774
    %v1783 = vadd.f32 %v1766, %v1775
    %v1784 = vadd.f32 %v1767, %v1776
    %v1785 = vadd.f32 %v1768, %v1777
    %v1786 = vstv %s158
    %v1787 = vadd.f32 %v1778, %v1786
    %v1788 = vadd.f32 %v1779, %v1786
    %v1789 = vadd.f32 %v1780, %v1786
    %v1790 = vadd.f32 %v1781, %v1786
    %v1791 = vadd.f32 %v1782, %v1786
    %v1792 = vadd.f32 %v1783, %v1786
    %v1793 = vadd.f32 %v1784, %v1786
    %v1794 = vadd.f32 %v1785, %v1786
    %v1795 = vmax.f32 %v1787, 0.0
    %v1796 = vmax.f32 %v1788, 0.0
    %v1797 = vmax.f32 %v1789, 0.0
    %v1798 = vmax.f32 %v1790, 0.0
    %v1799 = vmax.f32 %v1791, 0.0
    %v1800 = vmax.f32 %v1792, 0.0
    %v1801 = vmax.f32 %v1793, 0.0
    %v1802 = vmax.f32 %v1794, 0.0
    %v1803 = vstv %s166
    %v1804 = vmul.f32 %v1795, %v1803
    %v1805 = vmul.f32 %v1796, %v1803
    %v1806 = vmul.f32 %v1797, %v1803
    %v1807 = vmul.f32 %v1798, %v1803
    %v1808 = vmul.f32 %v1799, %v1803
    %v1809 = vmul.f32 %v1800, %v1803
    %v1810 = vmul.f32 %v1801, %v1803
    %v1811 = vmul.f32 %v1802, %v1803
    %v1812 = vadd.f32 %v1650, %v1804
    %v1813 = vadd.f32 %v1651, %v1805
    %v1814 = vadd.f32 %v1652, %v1806
    %v1815 = vadd.f32 %v1653, %v1807
    %v1816 = vadd.f32 %v1654, %v1808
    %v1817 = vadd.f32 %v1655, %v1809
    %v1818 = vadd.f32 %v1656, %v1810
    %v1819 = vadd.f32 %v1657, %v1811
    %v1820 = vstv %s167
    %v1821 = vadd.f32 %v1812, %v1820
    %v1822 = vadd.f32 %v1813, %v1820
    %v1823 = vadd.f32 %v1814, %v1820
    %v1824 = vadd.f32 %v1815, %v1820
    %v1825 = vadd.f32 %v1816, %v1820
    %v1826 = vadd.f32 %v1817, %v1820
    %v1827 = vadd.f32 %v1818, %v1820
    %v1828 = vadd.f32 %v1819, %v1820
    %s1829 = scalar_lea.vmem [#allocation5], %s168
    %v1830 = vlaneseq
    %vm1831 = vcmp.ge.s32.totalorder %v1830, 0
    %vm1832 = vcmp.lt.s32.totalorder %v1830, 256
    %vm1833 = vmand %vm1831, %vm1832
    %1834 = vst.msk [vmem:[%s1829] sm:$0x3] %vm1833, %v1821
    %1835 = vst.msk [vmem:[%s1829 + $0x2] sm:$0x3] %vm1833, %v1822
    %1836 = vst.msk [vmem:[%s1829 + $0x4] sm:$0x3] %vm1833, %v1823
    %1837 = vst.msk [vmem:[%s1829 + $0x6] sm:$0x3] %vm1833, %v1824
    %1838 = vst.msk [vmem:[%s1829 + $0x8] sm:$0x3] %vm1833, %v1825
    %1839 = vst.msk [vmem:[%s1829 + $0xa] sm:$0x3] %vm1833, %v1826
    %1840 = vst.msk [vmem:[%s1829 + $0xc] sm:$0x3] %vm1833, %v1827
    %1841 = vst.msk [vmem:[%s1829 + $0xe] sm:$0x3] %vm1833, %v1828
    // Predicated region
    $region48: #{mlp_forward.1} parent=1 // pred_check
      _
    $region49: #{mlp_forward.1} parent=1 // pred_check_branch
      %1843 = sbr.rel (0) target = $region51
    $region50: #{mlp_forward.1} parent=1 // pred_region
      // Predicated region
      $region52: #{mlp_forward.1} parent=50 // pred_check
        _
      $region53: #{mlp_forward.1} parent=50 // pred_check_branch
        %1845 = sbr.rel (0) target = $region55
      $region54: #{mlp_forward.1} parent=50 // pred_region
        // Predicated region
        $region56: #{mlp_forward.1} parent=54 // pred_check
          _
        $region57: #{mlp_forward.1} parent=54 // pred_check_branch
          %1847 = sbr.rel target = $region59
        $region58: #{mlp_forward.1} parent=54 // pred_region
          // Predicated region
          $region71: #{mlp_forward.1} parent=58 // pred_check
            _
          $region72: #{mlp_forward.1} parent=58 // pred_check_branch
            %1863 = sbr.rel (0) target = $region74
          $region73: #{mlp_forward.1} parent=58 // pred_region
            %s1865 = ssub.s32 4, 1
            loop: start=0, step=1, limit=1
            $region75: #{mlp_forward.1} parent=73 // loop_pre_header
              _
            $region76: #{mlp_forward.1} parent=73 // loop_header
              %s1867 = sphi 0, %s1871
              %p1868 = scmp.ge.s32.totalorder %s1867, 1
              %s1872 = sphi [#allocation5], [#allocation5]
              %s1873 = sphi %s2, %s2
            $region77: #{mlp_forward.1} parent=73 // loop_header_branch
              %1870 = sbr.rel (%p1868) target = $region81
            $region78: #{mlp_forward.1} parent=73 // loop_body
              %v1874 = vld [vmem:[%s1872] sm:%s1865]
              %1875 = vst [vmem:[%s1873] sm:%s1865] %v1874
            $region79: #{mlp_forward.1} parent=73 // loop_footer
              %s1871 = sadd.s32 1, %s1867
            $region80: #{mlp_forward.1} parent=73 // loop_footer_branch
              %1866 = sbr.rel target = $region76
            $region81: #{mlp_forward.1} parent=73 // loop_exit
              _
          $region74: #{mlp_forward.1} parent=58 // pred_fallthru
            _
        $region59: #{mlp_forward.1} parent=54 // pred_fallthru
          _
        // Predicated region
        $region60: #{mlp_forward.1} parent=54 // pred_check
          _
        $region61: #{mlp_forward.1} parent=54 // pred_check_branch
          %1849 = sbr.rel (0) target = $region63
        $region62: #{mlp_forward.1} parent=54 // pred_region
          %s1851 = ssub.s32 4, 1
          loop: start=0, step=1, limit=1
          $region64: #{mlp_forward.1} parent=62 // loop_pre_header
            _
          $region65: #{mlp_forward.1} parent=62 // loop_header
            %s1853 = sphi 0, %s1857
            %p1854 = scmp.ge.s32.totalorder %s1853, 1
            %s1858 = sphi [#allocation5], [#allocation5]
            %s1859 = sphi %s2, %s2
          $region66: #{mlp_forward.1} parent=62 // loop_header_branch
            %1856 = sbr.rel (%p1854) target = $region70
          $region67: #{mlp_forward.1} parent=62 // loop_body
            %v1860 = vld [vmem:[%s1858] sm:%s1851]
            %1861 = vst [vmem:[%s1859] sm:%s1851] %v1860
          $region68: #{mlp_forward.1} parent=62 // loop_footer
            %s1857 = sadd.s32 1, %s1853
          $region69: #{mlp_forward.1} parent=62 // loop_footer_branch
            %1852 = sbr.rel target = $region65
          $region70: #{mlp_forward.1} parent=62 // loop_exit
            _
        $region63: #{mlp_forward.1} parent=54 // pred_fallthru
          _
      $region55: #{mlp_forward.1} parent=50 // pred_fallthru
        _
      %1876 = vnop
    $region51: #{mlp_forward.1} parent=1 // pred_fallthru
      _
    // Predicated region
    $region82: #{mlp_forward.1} parent=1 // pred_check
      _
    $region83: #{mlp_forward.1} parent=1 // pred_check_branch
      %1878 = sbr.rel (0) target = $region85
    $region84: #{mlp_forward.1} parent=1 // pred_region
      _
    $region85: #{mlp_forward.1} parent=1 // pred_fallthru
      _
    %1879 = vsyncpa [#allocation3], 1

</llo_original>
